<compile_context>
chip_gen: v7x
topology: tpu7x:2x2x1
jax: 0.10.0
libtpu: 0.0.40
codegen_flags: <defaults>
</compile_context>

<pallas_src>
import functools

import jax
import jax.numpy as jnp
import numpy as np
from jax.experimental import pallas as pl
from jax.experimental.pallas import tpu as pltpu

EPS = 1e-5


# ---------------------------------------------------------------------------
# Kernel
# ---------------------------------------------------------------------------
def _conv_gn_silu(x3, wf_ref, bgb_ref, mf_ref, mft_ref, *, H, inv_cnt):
    """Conv3x3 (fused-K taps) + bias + GroupNorm + SiLU over NB samples.

    x3:      (NB, H, W*Ci) float32 activations, lane-dense.
    wf_ref:  (3*W*Ci, W*Co) bf16 fused conv weight (ky taps stacked along K,
             kx taps and left/right zero padding folded in on the host).
    bgb_ref: (3, W*Co) f32 rows = conv bias / GN gamma / GN beta (tiled on W).
    mf_ref:  (W*Co, G) f32 lane -> group one-hot.   mft_ref: (G, W*Co).
    Returns (NB, H, W*Co) float32.
    """
    NB = x3.shape[0]
    WCi = x3.shape[-1]

    # im2col along rows: slab row (n, h) = [x[n,h-1] | x[n,h] | x[n,h+1]] with
    # zero row halos -> a single (NB*H, 3*W*Ci) bf16 LHS, one MXU push/drain.
    zrow = jnp.zeros((NB, 1, WCi), jnp.float32)
    xp = jnp.concatenate([zrow, x3, zrow], axis=1)              # (NB, H+2, WCi)
    slab = jnp.concatenate([xp[:, 0:H], x3, xp[:, 2:H + 2]], axis=2)
    slab = slab.reshape(NB * H, 3 * WCi).astype(jnp.bfloat16)

    acc = jnp.dot(slab, wf_ref[...], preferred_element_type=jnp.float32)
    acc = acc + bgb_ref[0:1, :]                                 # conv bias
    WCo = acc.shape[-1]
    acc3 = acc.reshape(NB, H, WCo)

    # GroupNorm stats for all NB samples: stack sum & sum-of-squares into ONE
    # (2*NB, W*Co) @ (W*Co, G) matmul, then ONE (2*NB, G) @ (G, W*Co) matmul
    # to broadcast the per-group mean/var back onto fused lanes.
    s = jnp.sum(acc3, axis=1)                                   # (NB, WCo)
    ss = jnp.sum(acc3 * acc3, axis=1)                           # (NB, WCo)
    grp = jnp.dot(jnp.concatenate([s, ss], axis=0), mf_ref[...],
                  preferred_element_type=jnp.float32) * inv_cnt   # (2NB, G)
    mean_g = grp[:NB]
    var_g = jnp.maximum(grp[NB:] - mean_g * mean_g, 0.0)        # clamp >= 0
    lane = jnp.dot(jnp.concatenate([mean_g, var_g], axis=0), mft_ref[...],
                   preferred_element_type=jnp.float32)          # (2NB, WCo)
    mean = lane[:NB].reshape(NB, 1, WCo)
    rstd = jax.lax.rsqrt(lane[NB:] + EPS).reshape(NB, 1, WCo)

    y = (acc3 - mean) * rstd
    y = y * bgb_ref[1:2, :] + bgb_ref[2:3, :]
    return y * jax.nn.sigmoid(y)                                # SiLU (f32)


def resnet_block_kernel(x_ref, wf1_ref, bgb1_ref, wf2_ref, bgb2_ref,
                        wres_ref, bres_ref, mf_ref, mft_ref, o_ref,
                        *, H, W, Cin, Cout, inv_cnt):
    NB = x_ref.shape[0]
    x = x_ref[...]                                              # (NB, H, W*Cin)

    h1 = _conv_gn_silu(x, wf1_ref, bgb1_ref, mf_ref, mft_ref,
                       H=H, inv_cnt=inv_cnt)                    # (NB, H, W*Cout)
    h2 = _conv_gn_silu(h1, wf2_ref, bgb2_ref, mf_ref, mft_ref,
                       H=H, inv_cnt=inv_cnt)

    # 1x1 residual conv as one batched matmul (M = NB*H).
    # TODO(synk): on v5e, fold this into block1's RHS (widen the ky=1 tap) to
    # save one MXU drain through the serial MRF.
    x_flat = x.reshape(NB * H, W * Cin).astype(jnp.bfloat16)
    res = jnp.dot(x_flat, wres_ref[...],
                  preferred_element_type=jnp.float32) + bres_ref[...]
    o_ref[...] = (h2 + res.reshape(NB, H, W * Cout)).astype(o_ref.dtype)


# ---------------------------------------------------------------------------
# Host-side one-time weight re-layout into the fused (W*C) form
# ---------------------------------------------------------------------------
def make_fused_params(params, W, groups):
    """params: HWIO conv weights / (Cin,Cout) res weight / (1,C) vectors."""
    w1 = np.asarray(params["w1"], np.float32)          # (3, 3, Cin, Cout)
    w2 = np.asarray(params["w2"], np.float32)          # (3, 3, Cout, Cout)
    Cin, Cout = w1.shape[2], w1.shape[3]
    assert Cout % groups == 0
    cpg = Cout // groups

    def fuse_conv(w):
        # (3,3,ci,co) -> (3*W*ci, W*co): kx taps + left/right zero padding are
        # folded in; the three ky taps are stacked along K for a single matmul.
        ci, co = w.shape[2], w.shape[3]
        out = np.zeros((3, W * ci, W * co), np.float32)
        for ky in range(3):
            for kx in range(3):
                for p in range(W):
                    q = p + kx - 1
                    if 0 <= q < W:
                        out[ky, q * ci:(q + 1) * ci,
                            p * co:(p + 1) * co] = w[ky, kx]
        return out.reshape(3 * W * ci, W * co)

    def tile_c(v):                                      # (1, C) -> (1, W*C)
        return np.tile(np.asarray(v, np.float32).reshape(-1), W)[None, :]

    # residual 1x1 conv (Identity case -> eye / zeros)
    if "wres" in params:
        wres = np.asarray(params["wres"], np.float32)   # (Cin, Cout)
        bres = params["bres"]
    else:
        wres = np.eye(Cin, Cout, dtype=np.float32)
        bres = np.zeros((1, Cout), np.float32)
    wres_f = np.zeros((W * Cin, W * Cout), np.float32)
    for p in range(W):
        wres_f[p * Cin:(p + 1) * Cin, p * Cout:(p + 1) * Cout] = wres

    # fused-lane -> group one-hot membership (lane l belongs to (l%Cout)//cpg)
    mf = (((np.arange(W * Cout) % Cout) // cpg)[:, None]
          == np.arange(groups)[None, :]).astype(np.float32)      # (W*Cout, G)

    return {
        # MXU operands in bf16; bias/gamma/beta and GN one-hots stay f32.
        "wf1": jnp.asarray(fuse_conv(w1), jnp.bfloat16),
        "bgb1": jnp.asarray(np.concatenate(
            [tile_c(params["b1"]), tile_c(params["g1"]),
             tile_c(params["bt1"])], axis=0)),
        "wf2": jnp.asarray(fuse_conv(w2), jnp.bfloat16),
        "bgb2": jnp.asarray(np.concatenate(
            [tile_c(params["b2"]), tile_c(params["g2"]),
             tile_c(params["bt2"])], axis=0)),
        "wres": jnp.asarray(wres_f, jnp.bfloat16),
        "bres": jnp.asarray(tile_c(bres)),
        "mf": jnp.asarray(mf),
        "mft": jnp.asarray(np.ascontiguousarray(mf.T)),
    }


# ---------------------------------------------------------------------------
# pallas_call wrapper
# ---------------------------------------------------------------------------
def resnet_block_forward(x, fused, groups, *, samples_per_step=8):
    """x: (N, H, W, Cin) float32 -> (N, H, W, Cout) float32."""
    N, H, W, Cin = x.shape
    Cout = fused["bres"].shape[-1] // W
    cpg = Cout // groups
    NB = min(samples_per_step, N)
    assert N % NB == 0, "samples_per_step must divide batch"

    x_f = x.reshape(N, H, W * Cin)                      # free reshape

    def const_spec(a):
        # Constant index_map -> each weight is DMA'd once and stays resident.
        # TODO(synk): add pipeline_mode=pl.Buffered(1) on v7x to single-buffer
        # the constant weights (halves resident weight VMEM at large sizes).
        return pl.BlockSpec(a.shape, lambda n: (0,) * a.ndim)

    in_specs = [
        pl.BlockSpec((NB, H, W * Cin), lambda n: (n, 0, 0)),    # x
        const_spec(fused["wf1"]), const_spec(fused["bgb1"]),
        const_spec(fused["wf2"]), const_spec(fused["bgb2"]),
        const_spec(fused["wres"]), const_spec(fused["bres"]),
        const_spec(fused["mf"]), const_spec(fused["mft"]),
    ]
    out_spec = pl.BlockSpec((NB, H, W * Cout), lambda n: (n, 0, 0))

    kernel = functools.partial(
        resnet_block_kernel, H=H, W=W, Cin=Cin, Cout=Cout,
        inv_cnt=1.0 / float(H * W * cpg))

    grid_spec = pltpu.PrefetchScalarGridSpec(
        num_scalar_prefetch=0,
        grid=(N // NB,),
        in_specs=in_specs,
        out_specs=out_spec,
    )

    out_f = pl.pallas_call(
        kernel,
        out_shape=jax.ShapeDtypeStruct((N, H, W * Cout), jnp.float32),
        grid_spec=grid_spec,
        compiler_params=pltpu.CompilerParams(
            dimension_semantics=("parallel",),          # batch -> both TCs
            vmem_limit_bytes=32 * 1024 * 1024),
    )(x_f,
      fused["wf1"], fused["bgb1"], fused["wf2"], fused["bgb2"],
      fused["wres"], fused["bres"], fused["mf"], fused["mft"])

    return out_f.reshape(N, H, W, Cout)                 # free reshape


# ---------------------------------------------------------------------------
# Pure-JAX reference (for correctness check)
# ---------------------------------------------------------------------------
def _ref_block(x, w, b, g, bt, groups):
    y = jax.lax.conv_general_dilated(
        x, w, window_strides=(1, 1), padding="SAME",
        dimension_numbers=("NHWC", "HWIO", "NHWC")) + b.reshape(1, 1, 1, -1)
    N, H, W, C = y.shape
    yg = y.reshape(N, H, W, groups, C // groups)
    mean = yg.mean(axis=(1, 2, 4), keepdims=True)
    var = yg.var(axis=(1, 2, 4), keepdims=True)
    yn = ((yg - mean) / jnp.sqrt(var + EPS)).reshape(N, H, W, C)
    yn = yn * g.reshape(1, 1, 1, -1) + bt.reshape(1, 1, 1, -1)
    return jax.nn.silu(yn)


def _ref_forward(x, params, groups):
    h = _ref_block(x, params["w1"], params["b1"][0], params["g1"][0],
                   params["bt1"][0], groups)
    h = _ref_block(h, params["w2"], params["b2"][0], params["g2"][0],
                   params["bt2"][0], groups)
    res = jnp.einsum("nhwc,co->nhwo", x, params["wres"]) + params["bres"][0]
    return h + res


if __name__ == "__main__":
    # NB=8 samples per grid step, grid of 4 steps -> >=2 iterations per
    # TensorCore so BlockSpec double-buffering actually overlaps the x/out DMA.
    N, H, W = 32, 16, 16
    dim, dim_out, groups = 4, 8, 8   # dim != dim_out -> res_conv is a 1x1 conv

    key = jax.random.PRNGKey(0)
    ks = jax.random.split(key, 12)

    params = {
        "w1":   0.2 * jax.random.normal(ks[0], (3, 3, dim, dim_out), jnp.float32),
        "b1":   0.1 * jax.random.normal(ks[1], (1, dim_out), jnp.float32),
        "g1":   1.0 + 0.1 * jax.random.normal(ks[2], (1, dim_out), jnp.float32),
        "bt1":  0.1 * jax.random.normal(ks[3], (1, dim_out), jnp.float32),
        "w2":   0.2 * jax.random.normal(ks[4], (3, 3, dim_out, dim_out), jnp.float32),
        "b2":   0.1 * jax.random.normal(ks[5], (1, dim_out), jnp.float32),
        "g2":   1.0 + 0.1 * jax.random.normal(ks[6], (1, dim_out), jnp.float32),
        "bt2":  0.1 * jax.random.normal(ks[7], (1, dim_out), jnp.float32),
        "wres": 0.2 * jax.random.normal(ks[8], (dim, dim_out), jnp.float32),
        "bres": 0.1 * jax.random.normal(ks[9], (1, dim_out), jnp.float32),
    }
    x = jax.random.normal(ks[10], (N, H, W, dim), jnp.float32)

    fused = make_fused_params(params, W, groups)
    out = resnet_block_forward(x, fused, groups, samples_per_step=8)
    out = jax.block_until_ready(out)

    ref = jax.block_until_ready(_ref_forward(x, params, groups))
    # bf16 MXU inputs (f32 accumulation) -> looser tolerance vs the f32 ref.
    np.testing.assert_allclose(np.asarray(out), np.asarray(ref),
                               rtol=5e-2, atol=5e-2)
    print("KERNEL_OK")
</pallas_src>

<mosaic_0001>
module attributes {stable_mosaic.version = 11 : i64} {
  func.func @resnet_block_kernel(%arg0: i32, %arg1: memref<8x16x64xf32, #tpu.memory_space<vmem>>, %arg2: memref<192x128xbf16, #tpu.memory_space<vmem>>, %arg3: memref<3x128xf32, #tpu.memory_space<vmem>>, %arg4: memref<384x128xbf16, #tpu.memory_space<vmem>>, %arg5: memref<3x128xf32, #tpu.memory_space<vmem>>, %arg6: memref<64x128xbf16, #tpu.memory_space<vmem>>, %arg7: memref<1x128xf32, #tpu.memory_space<vmem>>, %arg8: memref<128x8xf32, #tpu.memory_space<vmem>>, %arg9: memref<8x128xf32, #tpu.memory_space<vmem>>, %arg10: memref<8x16x128xf32, #tpu.memory_space<vmem>>) attributes {dimension_semantics = [#tpu.dimension_semantics<parallel>], iteration_bounds = array<i64: 4>, scalar_prefetch = 0 : i64, scratch_operands = 0 : i64, tpu.core_type = #tpu.core_type<tc>, window_params = [{transform_indices = @transform_0, window_bounds = array<i64: 8, 16, 64>}, {pipeline_mode = #tpu.pipeline_mode<synchronous>, transform_indices = @transform_1, window_bounds = array<i64: 192, 128>}, {pipeline_mode = #tpu.pipeline_mode<synchronous>, transform_indices = @transform_2, window_bounds = array<i64: 3, 128>}, {pipeline_mode = #tpu.pipeline_mode<synchronous>, transform_indices = @transform_3, window_bounds = array<i64: 384, 128>}, {pipeline_mode = #tpu.pipeline_mode<synchronous>, transform_indices = @transform_4, window_bounds = array<i64: 3, 128>}, {pipeline_mode = #tpu.pipeline_mode<synchronous>, transform_indices = @transform_5, window_bounds = array<i64: 64, 128>}, {pipeline_mode = #tpu.pipeline_mode<synchronous>, transform_indices = @transform_6, window_bounds = array<i64: 1, 128>}, {pipeline_mode = #tpu.pipeline_mode<synchronous>, transform_indices = @transform_7, window_bounds = array<i64: 128, 8>}, {pipeline_mode = #tpu.pipeline_mode<synchronous>, transform_indices = @transform_8, window_bounds = array<i64: 8, 128>}, {transform_indices = @transform_9, window_bounds = array<i64: 8, 16, 128>}]} {
    %c0 = arith.constant 0 : index
    %c0_0 = arith.constant 0 : index
    %c0_1 = arith.constant 0 : index
    %0 = vector.load %arg1[%c0, %c0_0, %c0_1] : memref<8x16x64xf32, #tpu.memory_space<vmem>>, vector<8x16x64xf32>
    %cst = arith.constant 0.000000e+00 : f32
    %1 = vector.broadcast %cst : f32 to vector<8x1x64xf32>
    %2 = tpu.concatenate %1, %0, %1 in 1 : vector<8x1x64xf32>, vector<8x16x64xf32>, vector<8x1x64xf32> -> vector<8x18x64xf32>
    %3 = vector.extract_strided_slice %2 {offsets = [0, 0, 0], sizes = [8, 16, 64], strides = [1, 1, 1]} : vector<8x18x64xf32> to vector<8x16x64xf32>
    %4 = vector.extract_strided_slice %2 {offsets = [0, 2, 0], sizes = [8, 16, 64], strides = [1, 1, 1]} : vector<8x18x64xf32> to vector<8x16x64xf32>
    %5 = tpu.concatenate %3, %0, %4 in 2 : vector<8x16x64xf32>, vector<8x16x64xf32>, vector<8x16x64xf32> -> vector<8x16x192xf32>
    %6 = vector.shape_cast %5 : vector<8x16x192xf32> to vector<128x192xf32>
    %7 = arith.truncf %6 : vector<128x192xf32> to vector<128x192xbf16>
    %c0_2 = arith.constant 0 : index
    %c0_3 = arith.constant 0 : index
    %8 = vector.load %arg2[%c0_2, %c0_3] : memref<192x128xbf16, #tpu.memory_space<vmem>>, vector<192x128xbf16>
    %cst_4 = arith.constant dense<0.000000e+00> : vector<128x128xf32>
    %9 = tpu.matmul %7, %8, %cst_4 {dimension_numbers = #tpu.dot_dimension_numbers<[1], [0], [0], [1], [0, 0, 1, 1], [], []>} : vector<128x192xbf16>, vector<192x128xbf16>, vector<128x128xf32> -> vector<128x128xf32>
    %c0_5 = arith.constant 0 : index
    %c0_6 = arith.constant 0 : index
    %10 = vector.load %arg3[%c0_5, %c0_6] : memref<3x128xf32, #tpu.memory_space<vmem>>, vector<1x128xf32>
    %11 = vector.broadcast %10 : vector<1x128xf32> to vector<128x128xf32>
    %12 = arith.addf %9, %11 : vector<128x128xf32>
    %13 = vector.shape_cast %12 : vector<128x128xf32> to vector<8x16x128xf32>
    %cst_7 = arith.constant dense<0.000000e+00> : vector<8x128xf32>
    %14 = vector.multi_reduction <add>, %13, %cst_7 [1] : vector<8x16x128xf32> to vector<8x128xf32>
    %15 = arith.mulf %13, %13 : vector<8x16x128xf32>
    %cst_8 = arith.constant dense<0.000000e+00> : vector<8x128xf32>
    %16 = vector.multi_reduction <add>, %15, %cst_8 [1] : vector<8x16x128xf32> to vector<8x128xf32>
    %17 = tpu.concatenate %14, %16 in 0 : vector<8x128xf32>, vector<8x128xf32> -> vector<16x128xf32>
    %c0_9 = arith.constant 0 : index
    %c0_10 = arith.constant 0 : index
    %18 = vector.load %arg8[%c0_9, %c0_10] : memref<128x8xf32, #tpu.memory_space<vmem>>, vector<128x8xf32>
    %cst_11 = arith.constant dense<0.000000e+00> : vector<16x8xf32>
    %19 = tpu.matmul %17, %18, %cst_11 {dimension_numbers = #tpu.dot_dimension_numbers<[1], [0], [0], [1], [0, 0, 1, 1], [], []>} : vector<16x128xf32>, vector<128x8xf32>, vector<16x8xf32> -> vector<16x8xf32>
    %cst_12 = arith.constant 3.906250e-03 : f32
    %20 = vector.broadcast %cst_12 : f32 to vector<16x8xf32>
    %21 = arith.mulf %19, %20 : vector<16x8xf32>
    %22 = vector.extract_strided_slice %21 {offsets = [0, 0], sizes = [8, 8], strides = [1, 1]} : vector<16x8xf32> to vector<8x8xf32>
    %23 = vector.extract_strided_slice %21 {offsets = [8, 0], sizes = [8, 8], strides = [1, 1]} : vector<16x8xf32> to vector<8x8xf32>
    %24 = arith.mulf %22, %22 : vector<8x8xf32>
    %25 = arith.subf %23, %24 : vector<8x8xf32>
    %cst_13 = arith.constant 0.000000e+00 : f32
    %26 = vector.broadcast %cst_13 : f32 to vector<8x8xf32>
    %27 = arith.maximumf %25, %26 : vector<8x8xf32>
    %28 = tpu.concatenate %22, %27 in 0 : vector<8x8xf32>, vector<8x8xf32> -> vector<16x8xf32>
    %c0_14 = arith.constant 0 : index
    %c0_15 = arith.constant 0 : index
    %29 = vector.load %arg9[%c0_14, %c0_15] : memref<8x128xf32, #tpu.memory_space<vmem>>, vector<8x128xf32>
    %cst_16 = arith.constant dense<0.000000e+00> : vector<16x128xf32>
    %30 = tpu.matmul %28, %29, %cst_16 {dimension_numbers = #tpu.dot_dimension_numbers<[1], [0], [0], [1], [0, 0, 1, 1], [], []>} : vector<16x8xf32>, vector<8x128xf32>, vector<16x128xf32> -> vector<16x128xf32>
    %31 = vector.extract_strided_slice %30 {offsets = [0, 0], sizes = [8, 128], strides = [1, 1]} : vector<16x128xf32> to vector<8x128xf32>
    %32 = vector.shape_cast %31 : vector<8x128xf32> to vector<8x1x128xf32>
    %33 = vector.extract_strided_slice %30 {offsets = [8, 0], sizes = [8, 128], strides = [1, 1]} : vector<16x128xf32> to vector<8x128xf32>
    %cst_17 = arith.constant 9.99999974E-6 : f32
    %34 = vector.broadcast %cst_17 : f32 to vector<8x128xf32>
    %35 = arith.addf %33, %34 : vector<8x128xf32>
    %36 = math.rsqrt %35 : vector<8x128xf32>
    %37 = vector.shape_cast %36 : vector<8x128xf32> to vector<8x1x128xf32>
    %38 = vector.broadcast %32 : vector<8x1x128xf32> to vector<8x16x128xf32>
    %39 = arith.subf %13, %38 : vector<8x16x128xf32>
    %40 = vector.broadcast %37 : vector<8x1x128xf32> to vector<8x16x128xf32>
    %41 = arith.mulf %39, %40 : vector<8x16x128xf32>
    %c1 = arith.constant 1 : index
    %c0_18 = arith.constant 0 : index
    %42 = vector.load %arg3[%c1, %c0_18] : memref<3x128xf32, #tpu.memory_space<vmem>>, vector<1x128xf32>
    %43 = vector.shape_cast %42 : vector<1x128xf32> to vector<1x1x128xf32>
    %44 = vector.broadcast %43 : vector<1x1x128xf32> to vector<8x16x128xf32>
    %45 = arith.mulf %41, %44 : vector<8x16x128xf32>
    %c2 = arith.constant 2 : index
    %c0_19 = arith.constant 0 : index
    %46 = vector.load %arg3[%c2, %c0_19] : memref<3x128xf32, #tpu.memory_space<vmem>>, vector<1x128xf32>
    %47 = vector.shape_cast %46 : vector<1x128xf32> to vector<1x1x128xf32>
    %48 = vector.broadcast %47 : vector<1x1x128xf32> to vector<8x16x128xf32>
    %49 = arith.addf %45, %48 : vector<8x16x128xf32>
    %50 = arith.negf %49 : vector<8x16x128xf32>
    %51 = math.exp %50 : vector<8x16x128xf32>
    %cst_20 = arith.constant 1.000000e+00 : f32
    %52 = vector.broadcast %cst_20 : f32 to vector<8x16x128xf32>
    %53 = arith.addf %52, %51 : vector<8x16x128xf32>
    %54 = arith.divf %52, %53 : vector<8x16x128xf32>
    %55 = arith.mulf %49, %54 : vector<8x16x128xf32>
    %cst_21 = arith.constant 0.000000e+00 : f32
    %56 = vector.broadcast %cst_21 : f32 to vector<8x1x128xf32>
    %57 = tpu.concatenate %56, %55, %56 in 1 : vector<8x1x128xf32>, vector<8x16x128xf32>, vector<8x1x128xf32> -> vector<8x18x128xf32>
    %58 = vector.extract_strided_slice %57 {offsets = [0, 0, 0], sizes = [8, 16, 128], strides = [1, 1, 1]} : vector<8x18x128xf32> to vector<8x16x128xf32>
    %59 = vector.extract_strided_slice %57 {offsets = [0, 2, 0], sizes = [8, 16, 128], strides = [1, 1, 1]} : vector<8x18x128xf32> to vector<8x16x128xf32>
    %60 = tpu.concatenate %58, %55, %59 in 2 : vector<8x16x128xf32>, vector<8x16x128xf32>, vector<8x16x128xf32> -> vector<8x16x384xf32>
    %61 = vector.shape_cast %60 : vector<8x16x384xf32> to vector<128x384xf32>
    %62 = arith.truncf %61 : vector<128x384xf32> to vector<128x384xbf16>
    %c0_22 = arith.constant 0 : index
    %c0_23 = arith.constant 0 : index
    %63 = vector.load %arg4[%c0_22, %c0_23] : memref<384x128xbf16, #tpu.memory_space<vmem>>, vector<384x128xbf16>
    %cst_24 = arith.constant dense<0.000000e+00> : vector<128x128xf32>
    %64 = tpu.matmul %62, %63, %cst_24 {dimension_numbers = #tpu.dot_dimension_numbers<[1], [0], [0], [1], [0, 0, 1, 1], [], []>} : vector<128x384xbf16>, vector<384x128xbf16>, vector<128x128xf32> -> vector<128x128xf32>
    %c0_25 = arith.constant 0 : index
    %c0_26 = arith.constant 0 : index
    %65 = vector.load %arg5[%c0_25, %c0_26] : memref<3x128xf32, #tpu.memory_space<vmem>>, vector<1x128xf32>
    %66 = vector.broadcast %65 : vector<1x128xf32> to vector<128x128xf32>
    %67 = arith.addf %64, %66 : vector<128x128xf32>
    %68 = vector.shape_cast %67 : vector<128x128xf32> to vector<8x16x128xf32>
    %cst_27 = arith.constant dense<0.000000e+00> : vector<8x128xf32>
    %69 = vector.multi_reduction <add>, %68, %cst_27 [1] : vector<8x16x128xf32> to vector<8x128xf32>
    %70 = arith.mulf %68, %68 : vector<8x16x128xf32>
    %cst_28 = arith.constant dense<0.000000e+00> : vector<8x128xf32>
    %71 = vector.multi_reduction <add>, %70, %cst_28 [1] : vector<8x16x128xf32> to vector<8x128xf32>
    %72 = tpu.concatenate %69, %71 in 0 : vector<8x128xf32>, vector<8x128xf32> -> vector<16x128xf32>
    %c0_29 = arith.constant 0 : index
    %c0_30 = arith.constant 0 : index
    %73 = vector.load %arg8[%c0_29, %c0_30] : memref<128x8xf32, #tpu.memory_space<vmem>>, vector<128x8xf32>
    %cst_31 = arith.constant dense<0.000000e+00> : vector<16x8xf32>
    %74 = tpu.matmul %72, %73, %cst_31 {dimension_numbers = #tpu.dot_dimension_numbers<[1], [0], [0], [1], [0, 0, 1, 1], [], []>} : vector<16x128xf32>, vector<128x8xf32>, vector<16x8xf32> -> vector<16x8xf32>
    %cst_32 = arith.constant 3.906250e-03 : f32
    %75 = vector.broadcast %cst_32 : f32 to vector<16x8xf32>
    %76 = arith.mulf %74, %75 : vector<16x8xf32>
    %77 = vector.extract_strided_slice %76 {offsets = [0, 0], sizes = [8, 8], strides = [1, 1]} : vector<16x8xf32> to vector<8x8xf32>
    %78 = vector.extract_strided_slice %76 {offsets = [8, 0], sizes = [8, 8], strides = [1, 1]} : vector<16x8xf32> to vector<8x8xf32>
    %79 = arith.mulf %77, %77 : vector<8x8xf32>
    %80 = arith.subf %78, %79 : vector<8x8xf32>
    %cst_33 = arith.constant 0.000000e+00 : f32
    %81 = vector.broadcast %cst_33 : f32 to vector<8x8xf32>
    %82 = arith.maximumf %80, %81 : vector<8x8xf32>
    %83 = tpu.concatenate %77, %82 in 0 : vector<8x8xf32>, vector<8x8xf32> -> vector<16x8xf32>
    %c0_34 = arith.constant 0 : index
    %c0_35 = arith.constant 0 : index
    %84 = vector.load %arg9[%c0_34, %c0_35] : memref<8x128xf32, #tpu.memory_space<vmem>>, vector<8x128xf32>
    %cst_36 = arith.constant dense<0.000000e+00> : vector<16x128xf32>
    %85 = tpu.matmul %83, %84, %cst_36 {dimension_numbers = #tpu.dot_dimension_numbers<[1], [0], [0], [1], [0, 0, 1, 1], [], []>} : vector<16x8xf32>, vector<8x128xf32>, vector<16x128xf32> -> vector<16x128xf32>
    %86 = vector.extract_strided_slice %85 {offsets = [0, 0], sizes = [8, 128], strides = [1, 1]} : vector<16x128xf32> to vector<8x128xf32>
    %87 = vector.shape_cast %86 : vector<8x128xf32> to vector<8x1x128xf32>
    %88 = vector.extract_strided_slice %85 {offsets = [8, 0], sizes = [8, 128], strides = [1, 1]} : vector<16x128xf32> to vector<8x128xf32>
    %cst_37 = arith.constant 9.99999974E-6 : f32
    %89 = vector.broadcast %cst_37 : f32 to vector<8x128xf32>
    %90 = arith.addf %88, %89 : vector<8x128xf32>
    %91 = math.rsqrt %90 : vector<8x128xf32>
    %92 = vector.shape_cast %91 : vector<8x128xf32> to vector<8x1x128xf32>
    %93 = vector.broadcast %87 : vector<8x1x128xf32> to vector<8x16x128xf32>
    %94 = arith.subf %68, %93 : vector<8x16x128xf32>
    %95 = vector.broadcast %92 : vector<8x1x128xf32> to vector<8x16x128xf32>
    %96 = arith.mulf %94, %95 : vector<8x16x128xf32>
    %c1_38 = arith.constant 1 : index
    %c0_39 = arith.constant 0 : index
    %97 = vector.load %arg5[%c1_38, %c0_39] : memref<3x128xf32, #tpu.memory_space<vmem>>, vector<1x128xf32>
    %98 = vector.shape_cast %97 : vector<1x128xf32> to vector<1x1x128xf32>
    %99 = vector.broadcast %98 : vector<1x1x128xf32> to vector<8x16x128xf32>
    %100 = arith.mulf %96, %99 : vector<8x16x128xf32>
    %c2_40 = arith.constant 2 : index
    %c0_41 = arith.constant 0 : index
    %101 = vector.load %arg5[%c2_40, %c0_41] : memref<3x128xf32, #tpu.memory_space<vmem>>, vector<1x128xf32>
    %102 = vector.shape_cast %101 : vector<1x128xf32> to vector<1x1x128xf32>
    %103 = vector.broadcast %102 : vector<1x1x128xf32> to vector<8x16x128xf32>
    %104 = arith.addf %100, %103 : vector<8x16x128xf32>
    %105 = arith.negf %104 : vector<8x16x128xf32>
    %106 = math.exp %105 : vector<8x16x128xf32>
    %cst_42 = arith.constant 1.000000e+00 : f32
    %107 = vector.broadcast %cst_42 : f32 to vector<8x16x128xf32>
    %108 = arith.addf %107, %106 : vector<8x16x128xf32>
    %109 = arith.divf %107, %108 : vector<8x16x128xf32>
    %110 = arith.mulf %104, %109 : vector<8x16x128xf32>
    %111 = vector.shape_cast %0 : vector<8x16x64xf32> to vector<128x64xf32>
    %112 = arith.truncf %111 : vector<128x64xf32> to vector<128x64xbf16>
    %c0_43 = arith.constant 0 : index
    %c0_44 = arith.constant 0 : index
    %113 = vector.load %arg6[%c0_43, %c0_44] : memref<64x128xbf16, #tpu.memory_space<vmem>>, vector<64x128xbf16>
    %cst_45 = arith.constant dense<0.000000e+00> : vector<128x128xf32>
    %114 = tpu.matmul %112, %113, %cst_45 {dimension_numbers = #tpu.dot_dimension_numbers<[1], [0], [0], [1], [0, 0, 1, 1], [], []>} : vector<128x64xbf16>, vector<64x128xbf16>, vector<128x128xf32> -> vector<128x128xf32>
    %c0_46 = arith.constant 0 : index
    %c0_47 = arith.constant 0 : index
    %115 = vector.load %arg7[%c0_46, %c0_47] : memref<1x128xf32, #tpu.memory_space<vmem>>, vector<1x128xf32>
    %116 = vector.broadcast %115 : vector<1x128xf32> to vector<128x128xf32>
    %117 = arith.addf %114, %116 : vector<128x128xf32>
    %118 = vector.shape_cast %117 : vector<128x128xf32> to vector<8x16x128xf32>
    %119 = arith.addf %110, %118 : vector<8x16x128xf32>
    %c0_48 = arith.constant 0 : index
    %c0_49 = arith.constant 0 : index
    %c0_50 = arith.constant 0 : index
    %120 = vector.load %arg10[%c0_48, %c0_49, %c0_50] : memref<8x16x128xf32, #tpu.memory_space<vmem>>, vector<8x16x128xf32>
    tpu.vector_store %arg10[%c0_48, %c0_49, %c0_50], %119 {strides = array<i32>} : memref<8x16x128xf32, #tpu.memory_space<vmem>>, vector<8x16x128xf32>,
    return
  }
  func.func @transform_0(%arg0: i32) -> (i32, i32, i32) {
    %c0_i32 = arith.constant 0 : i32
    %c0_i32_0 = arith.constant 0 : i32
    %c0_i32_1 = arith.constant 0 : i32
    return %arg0, %c0_i32, %c0_i32_0 : i32, i32, i32
  }
  func.func @transform_1(%arg0: i32) -> (i32, i32) {
    %c0_i32 = arith.constant 0 : i32
    %c0_i32_0 = arith.constant 0 : i32
    %c0_i32_1 = arith.constant 0 : i32
    return %c0_i32, %c0_i32_0 : i32, i32
  }
  func.func @transform_2(%arg0: i32) -> (i32, i32) {
    %c0_i32 = arith.constant 0 : i32
    %c0_i32_0 = arith.constant 0 : i32
    %c0_i32_1 = arith.constant 0 : i32
    return %c0_i32, %c0_i32_0 : i32, i32
  }
  func.func @transform_3(%arg0: i32) -> (i32, i32) {
    %c0_i32 = arith.constant 0 : i32
    %c0_i32_0 = arith.constant 0 : i32
    %c0_i32_1 = arith.constant 0 : i32
    return %c0_i32, %c0_i32_0 : i32, i32
  }
  func.func @transform_4(%arg0: i32) -> (i32, i32) {
    %c0_i32 = arith.constant 0 : i32
    %c0_i32_0 = arith.constant 0 : i32
    %c0_i32_1 = arith.constant 0 : i32
    return %c0_i32, %c0_i32_0 : i32, i32
  }
  func.func @transform_5(%arg0: i32) -> (i32, i32) {
    %c0_i32 = arith.constant 0 : i32
    %c0_i32_0 = arith.constant 0 : i32
    %c0_i32_1 = arith.constant 0 : i32
    return %c0_i32, %c0_i32_0 : i32, i32
  }
  func.func @transform_6(%arg0: i32) -> (i32, i32) {
    %c0_i32 = arith.constant 0 : i32
    %c0_i32_0 = arith.constant 0 : i32
    %c0_i32_1 = arith.constant 0 : i32
    return %c0_i32, %c0_i32_0 : i32, i32
  }
  func.func @transform_7(%arg0: i32) -> (i32, i32) {
    %c0_i32 = arith.constant 0 : i32
    %c0_i32_0 = arith.constant 0 : i32
    %c0_i32_1 = arith.constant 0 : i32
    return %c0_i32, %c0_i32_0 : i32, i32
  }
  func.func @transform_8(%arg0: i32) -> (i32, i32) {
    %c0_i32 = arith.constant 0 : i32
    %c0_i32_0 = arith.constant 0 : i32
    %c0_i32_1 = arith.constant 0 : i32
    return %c0_i32, %c0_i32_0 : i32, i32
  }
  func.func @transform_9(%arg0: i32) -> (i32, i32, i32) {
    %c0_i32 = arith.constant 0 : i32
    %c0_i32_0 = arith.constant 0 : i32
    %c0_i32_1 = arith.constant 0 : i32
    return %arg0, %c0_i32, %c0_i32_0 : i32, i32, i32
  }
}

</mosaic_0001>

<llo_original>
// kernel: tpu_custom_call.1
$region0: #{tpu_custom_call.1}
  #allocation0 [shape = 'u32[]', space=smem, size = 0x4, offset = 0x4, fixed_abs, tag = 'smem constant byte address 0x4 - core index']
  #allocation1 [shape = 'u32[144,128]{1,0:T(1,128)}', space=vmem, size = 0x12000, scoped, tag = 'internal scratch']
  %s0 = inlined_call_operand.hbm [shape: f32[32,16,64], index: 0, kind: input, shape index: {}]
  %s1 = inlined_call_operand.vmem [shape: bf16[192,128], index: 1, kind: input, shape index: {}]
  %s2 = inlined_call_operand.vmem [shape: f32[3,128], index: 2, kind: input, shape index: {}]
  %s3 = inlined_call_operand.hbm [shape: bf16[384,128], index: 3, kind: input, shape index: {}]
  %s4 = inlined_call_operand.hbm [shape: f32[3,128], index: 4, kind: input, shape index: {}]
  %s5 = inlined_call_operand.vmem [shape: bf16[64,128], index: 5, kind: input, shape index: {}]
  %s6 = inlined_call_operand.vmem [shape: f32[1,128], index: 6, kind: input, shape index: {}]
  %s7 = inlined_call_operand.vmem [shape: f32[128,8], index: 7, kind: input, shape index: {}]
  %s8 = inlined_call_operand.vmem [shape: f32[8,128], index: 8, kind: input, shape index: {}]
  %s9 = inlined_call_operand.hbm [shape: f32[32,16,128], index: 9, kind: output, shape index: {}]
  %s10 = sld [smem:[#allocation0]]
  $region81: #{tpu_custom_call.1} parent=0
    _
  %s12 = ssub.s32 1, %s10
  %s13 = scalar_select 0, %s12, %s10
  $region1: #{tpu_custom_call.1} parent=0
    #allocation2 [shape = 'u8[131072]{0}', space=vmem, size = 0x20000, scoped, tag = 'input window, operand 0']
    #allocation3 [shape = 's32[2]{0}', space=sflag, size = 0x8, scoped, tag = 'scoped memory for tpu_custom_call.1']
    #allocation4 [shape = 's32[2]{0}', space=sflag, size = 0x8, scoped, tag = 'scoped memory for tpu_custom_call.1']
    #allocation5 [shape = 'u8[98304]{0}', space=vmem, size = 0x18000, scoped, tag = 'input window, operand 3, single buffered']
    #allocation6 [shape = 's32[1]{0}', space=sflag, size = 0x4, scoped, tag = 'scoped memory for tpu_custom_call.1']
    #allocation7 [shape = 'u8[2048]{0}', space=vmem, size = 0x800, scoped, tag = 'input window, operand 4, single buffered']
    #allocation8 [shape = 'u8[131072]{0}', space=vmem, size = 0x20000, scoped, tag = 'output window, operand 0']
    %14 = vsyncpa [#allocation3], 0
    %s15 = scalar_lea.sflag [#allocation3], 1
    %16 = vsyncpa %s15, 0
    %17 = vsyncpa [#allocation6], 0
    %18 = vsyncpa [#allocation4], 0
    %s19 = scalar_lea.sflag [#allocation4], 1
    %20 = vsyncpa %s19, 0
    loop: start=0, step=1, limit=6
    $region2: #{tpu_custom_call.1} parent=1 // loop_pre_header
      _
    $region3: #{tpu_custom_call.1} parent=1 // loop_header
      %s22 = sphi 0, %s26
      %p23 = scmp.ge.s32.totalorder %s22, 6
      %s32 = sphi 0, %s34
      %s35 = sphi 0, %s32
      %s36 = sphi 0, %s35
      %s52 = sphi 0, %s36
      %s56 = sphi 0, %s56
      %s58 = sphi 0, %s56
      %s59 = sphi 0, %s58
      %s73 = sphi 0, %s59
      %s77 = sphi 0, %s77
      %s79 = sphi 0, %s77
      %s80 = sphi 0, %s79
      %s94 = sphi 0, %s80
      %s98 = sphi 0, %s98
      %s100 = sphi 0, %s98
      %s101 = sphi 0, %s100
      %s115 = sphi 0, %s101
      %s119 = sphi 0, %s119
      %s121 = sphi 0, %s119
      %s122 = sphi 0, %s121
      %s136 = sphi 0, %s122
      %s140 = sphi 0, %s140
      %s142 = sphi 0, %s140
      %s143 = sphi 0, %s142
      %s157 = sphi 0, %s143
      %s161 = sphi 0, %s161
      %s163 = sphi 0, %s161
      %s164 = sphi 0, %s163
      %s178 = sphi 0, %s164
      %s182 = sphi 0, %s182
      %s184 = sphi 0, %s182
      %s185 = sphi 0, %s184
      %s199 = sphi 0, %s185
      %s203 = sphi 0, %s203
      %s205 = sphi 0, %s203
      %s206 = sphi 0, %s205
      %s220 = sphi 0, %s206
      %s226 = sphi 0, %s228
      %s229 = sphi 0, %s226
      %s230 = sphi 0, %s229
      %s246 = sphi 0, %s230
    $region4: #{tpu_custom_call.1} parent=1 // loop_header_branch
      %25 = sbr.rel (%p23) target = $region8
    $region5: #{tpu_custom_call.1} parent=1 // loop_body
      %s27 = ssub.s32 %s22, 1
      %s28 = ssub.s32 %s22, 2
      %s29 = sadd.s32 %s22, 1
      %s30 = ssub.s32 %s22, %s29
      %p31 = scmp.eq.s32.totalorder %s30, 0
      %s33 = sadd.s32 %s32, 1
      %s34 = scalar_select %p31, %s32, %s33
      %p37 = pneg %p31
      %p38 = scmp.eq.s32.totalorder %s22, 3
      %p39 = por %p37, %p38
      %p40 = scmp.ne.s32.totalorder %s32, %s35
      %p41 = scmp.eq.s32.totalorder %s22, 0
      %p42 = por %p40, %p41
      %p43 = scmp.ne.s32.totalorder %s32, %s35
      %p44 = scmp.eq.s32.totalorder %s27, 3
      %p45 = por %p43, %p44
      %p46 = scmp.ne.s32.totalorder %s35, %s36
      %p47 = scmp.eq.s32.totalorder %s27, 0
      %p48 = por %p46, %p47
      %p49 = scmp.ne.s32.totalorder %s35, %s36
      %p50 = scmp.eq.s32.totalorder %s28, 3
      %p51 = por %p49, %p50
      %p53 = scmp.ne.s32.totalorder %s36, %s52
      %p54 = scmp.eq.s32.totalorder %s28, 0
      %p55 = por %p53, %p54
      %s57 = sadd.s32 %s56, 1
      %p60 = scmp.eq.s32.totalorder %s22, 3
      %p61 = scmp.ne.s32.totalorder %s56, %s58
      %p62 = scmp.eq.s32.totalorder %s22, 0
      %p63 = por %p61, %p62
      %p64 = scmp.ne.s32.totalorder %s56, %s58
      %p65 = scmp.eq.s32.totalorder %s27, 3
      %p66 = por %p64, %p65
      %p67 = scmp.ne.s32.totalorder %s58, %s59
      %p68 = scmp.eq.s32.totalorder %s27, 0
      %p69 = por %p67, %p68
      %p70 = scmp.ne.s32.totalorder %s58, %s59
      %p71 = scmp.eq.s32.totalorder %s28, 3
      %p72 = por %p70, %p71
      %p74 = scmp.ne.s32.totalorder %s59, %s73
      %p75 = scmp.eq.s32.totalorder %s28, 0
      %p76 = por %p74, %p75
      %s78 = sadd.s32 %s77, 1
      %p81 = scmp.eq.s32.totalorder %s22, 3
      %p82 = scmp.ne.s32.totalorder %s77, %s79
      %p83 = scmp.eq.s32.totalorder %s22, 0
      %p84 = por %p82, %p83
      %p85 = scmp.ne.s32.totalorder %s77, %s79
      %p86 = scmp.eq.s32.totalorder %s27, 3
      %p87 = por %p85, %p86
      %p88 = scmp.ne.s32.totalorder %s79, %s80
      %p89 = scmp.eq.s32.totalorder %s27, 0
      %p90 = por %p88, %p89
      %p91 = scmp.ne.s32.totalorder %s79, %s80
      %p92 = scmp.eq.s32.totalorder %s28, 3
      %p93 = por %p91, %p92
      %p95 = scmp.ne.s32.totalorder %s80, %s94
      %p96 = scmp.eq.s32.totalorder %s28, 0
      %p97 = por %p95, %p96
      %s99 = sadd.s32 %s98, 1
      %p102 = scmp.eq.s32.totalorder %s22, 3
      %p103 = scmp.ne.s32.totalorder %s98, %s100
      %p104 = scmp.eq.s32.totalorder %s22, 0
      %p105 = por %p103, %p104
      %p106 = scmp.ne.s32.totalorder %s98, %s100
      %p107 = scmp.eq.s32.totalorder %s27, 3
      %p108 = por %p106, %p107
      %p109 = scmp.ne.s32.totalorder %s100, %s101
      %p110 = scmp.eq.s32.totalorder %s27, 0
      %p111 = por %p109, %p110
      %p112 = scmp.ne.s32.totalorder %s100, %s101
      %p113 = scmp.eq.s32.totalorder %s28, 3
      %p114 = por %p112, %p113
      %p116 = scmp.ne.s32.totalorder %s101, %s115
      %p117 = scmp.eq.s32.totalorder %s28, 0
      %p118 = por %p116, %p117
      %s120 = sadd.s32 %s119, 1
      %p123 = scmp.eq.s32.totalorder %s22, 3
      %p124 = scmp.ne.s32.totalorder %s119, %s121
      %p125 = scmp.eq.s32.totalorder %s22, 0
      %p126 = por %p124, %p125
      %p127 = scmp.ne.s32.totalorder %s119, %s121
      %p128 = scmp.eq.s32.totalorder %s27, 3
      %p129 = por %p127, %p128
      %p130 = scmp.ne.s32.totalorder %s121, %s122
      %p131 = scmp.eq.s32.totalorder %s27, 0
      %p132 = por %p130, %p131
      %p133 = scmp.ne.s32.totalorder %s121, %s122
      %p134 = scmp.eq.s32.totalorder %s28, 3
      %p135 = por %p133, %p134
      %p137 = scmp.ne.s32.totalorder %s122, %s136
      %p138 = scmp.eq.s32.totalorder %s28, 0
      %p139 = por %p137, %p138
      %s141 = sadd.s32 %s140, 1
      %p144 = scmp.eq.s32.totalorder %s22, 3
      %p145 = scmp.ne.s32.totalorder %s140, %s142
      %p146 = scmp.eq.s32.totalorder %s22, 0
      %p147 = por %p145, %p146
      %p148 = scmp.ne.s32.totalorder %s140, %s142
      %p149 = scmp.eq.s32.totalorder %s27, 3
      %p150 = por %p148, %p149
      %p151 = scmp.ne.s32.totalorder %s142, %s143
      %p152 = scmp.eq.s32.totalorder %s27, 0
      %p153 = por %p151, %p152
      %p154 = scmp.ne.s32.totalorder %s142, %s143
      %p155 = scmp.eq.s32.totalorder %s28, 3
      %p156 = por %p154, %p155
      %p158 = scmp.ne.s32.totalorder %s143, %s157
      %p159 = scmp.eq.s32.totalorder %s28, 0
      %p160 = por %p158, %p159
      %s162 = sadd.s32 %s161, 1
      %p165 = scmp.eq.s32.totalorder %s22, 3
      %p166 = scmp.ne.s32.totalorder %s161, %s163
      %p167 = scmp.eq.s32.totalorder %s22, 0
      %p168 = por %p166, %p167
      %p169 = scmp.ne.s32.totalorder %s161, %s163
      %p170 = scmp.eq.s32.totalorder %s27, 3
      %p171 = por %p169, %p170
      %p172 = scmp.ne.s32.totalorder %s163, %s164
      %p173 = scmp.eq.s32.totalorder %s27, 0
      %p174 = por %p172, %p173
      %p175 = scmp.ne.s32.totalorder %s163, %s164
      %p176 = scmp.eq.s32.totalorder %s28, 3
      %p177 = por %p175, %p176
      %p179 = scmp.ne.s32.totalorder %s164, %s178
      %p180 = scmp.eq.s32.totalorder %s28, 0
      %p181 = por %p179, %p180
      %s183 = sadd.s32 %s182, 1
      %p186 = scmp.eq.s32.totalorder %s22, 3
      %p187 = scmp.ne.s32.totalorder %s182, %s184
      %p188 = scmp.eq.s32.totalorder %s22, 0
      %p189 = por %p187, %p188
      %p190 = scmp.ne.s32.totalorder %s182, %s184
      %p191 = scmp.eq.s32.totalorder %s27, 3
      %p192 = por %p190, %p191
      %p193 = scmp.ne.s32.totalorder %s184, %s185
      %p194 = scmp.eq.s32.totalorder %s27, 0
      %p195 = por %p193, %p194
      %p196 = scmp.ne.s32.totalorder %s184, %s185
      %p197 = scmp.eq.s32.totalorder %s28, 3
      %p198 = por %p196, %p197
      %p200 = scmp.ne.s32.totalorder %s185, %s199
      %p201 = scmp.eq.s32.totalorder %s28, 0
      %p202 = por %p200, %p201
      %s204 = sadd.s32 %s203, 1
      %p207 = scmp.eq.s32.totalorder %s22, 3
      %p208 = scmp.ne.s32.totalorder %s203, %s205
      %p209 = scmp.eq.s32.totalorder %s22, 0
      %p210 = por %p208, %p209
      %p211 = scmp.ne.s32.totalorder %s203, %s205
      %p212 = scmp.eq.s32.totalorder %s27, 3
      %p213 = por %p211, %p212
      %p214 = scmp.ne.s32.totalorder %s205, %s206
      %p215 = scmp.eq.s32.totalorder %s27, 0
      %p216 = por %p214, %p215
      %p217 = scmp.ne.s32.totalorder %s205, %s206
      %p218 = scmp.eq.s32.totalorder %s28, 3
      %p219 = por %p217, %p218
      %p221 = scmp.ne.s32.totalorder %s206, %s220
      %p222 = scmp.eq.s32.totalorder %s28, 0
      %p223 = por %p221, %p222
      %s224 = ssub.s32 %s22, %s29
      %p225 = scmp.eq.s32.totalorder %s224, 0
      %s227 = sadd.s32 %s226, 1
      %s228 = scalar_select %p225, %s226, %s227
      %p231 = pneg %p225
      %p232 = scmp.eq.s32.totalorder %s22, 3
      %p233 = por %p231, %p232
      %p234 = scmp.ne.s32.totalorder %s226, %s229
      %p235 = scmp.eq.s32.totalorder %s22, 0
      %p236 = por %p234, %p235
      %p237 = scmp.ne.s32.totalorder %s226, %s229
      %p238 = scmp.eq.s32.totalorder %s27, 3
      %p239 = por %p237, %p238
      %p240 = scmp.ne.s32.totalorder %s229, %s230
      %p241 = scmp.eq.s32.totalorder %s27, 0
      %p242 = por %p240, %p241
      %p243 = scmp.ne.s32.totalorder %s229, %s230
      %p244 = scmp.eq.s32.totalorder %s28, 3
      %p245 = por %p243, %p244
      %p247 = scmp.ne.s32.totalorder %s230, %s246
      %p248 = scmp.eq.s32.totalorder %s28, 0
      %p249 = por %p247, %p248
      %p250 = scmp.le.s32.totalorder 1, %s22
      %p251 = scmp.lt.s32.totalorder %s22, 5
      %p252 = pnand %p250, %p251
      %p253 = pneg %p252
      // Predicated region
      $region9: #{tpu_custom_call.1} parent=5 // pred_check
        _
      $region10: #{tpu_custom_call.1} parent=5 // pred_check_branch
        %255 = sbr.rel (%p252) target = $region12
      $region11: #{tpu_custom_call.1} parent=5 // pred_region
        %s256 = ssub.s32 %s22, 1
        // Predicated region
        $region13: #{tpu_custom_call.1} parent=11 // pred_check
          %p257 = pneg %p69
        $region14: #{tpu_custom_call.1} parent=11 // pred_check_branch
          %259 = sbr.rel (%p257) target = $region16
        $region15: #{tpu_custom_call.1} parent=11 // pred_region
          _
        $region16: #{tpu_custom_call.1} parent=11 // pred_fallthru
          _
        // Predicated region
        $region17: #{tpu_custom_call.1} parent=11 // pred_check
          %p260 = pneg %p90
        $region18: #{tpu_custom_call.1} parent=11 // pred_check_branch
          %262 = sbr.rel (%p260) target = $region20
        $region19: #{tpu_custom_call.1} parent=11 // pred_region
          _
        $region20: #{tpu_custom_call.1} parent=11 // pred_fallthru
          _
        // Predicated region
        $region21: #{tpu_custom_call.1} parent=11 // pred_check
          %p263 = pneg %p111
        $region22: #{tpu_custom_call.1} parent=11 // pred_check_branch
          %265 = sbr.rel (%p263) target = $region24
        $region23: #{tpu_custom_call.1} parent=11 // pred_region
          %s267 = ssub.s32 3072, 3072
          %268 = vsyncadd [#allocation6], %s267
          %s269 = sshll.u32 [#allocation5], 4
          %s270 = int_to_ptr.vmem [resolvable:$true] %s269
          %275 = dma.hbm_to_vmem [thread:$0]  %s3, 3072, %s270, [#allocation6], 64, 64, 4
        $region24: #{tpu_custom_call.1} parent=11 // pred_fallthru
          _
        // Predicated region
        $region25: #{tpu_custom_call.1} parent=11 // pred_check
          %p276 = pneg %p132
        $region26: #{tpu_custom_call.1} parent=11 // pred_check_branch
          %278 = sbr.rel (%p276) target = $region28
        $region27: #{tpu_custom_call.1} parent=11 // pred_region
          %s280 = ssub.s32 64, 64
          %281 = vsyncadd [#allocation6], %s280
          %s283 = sshll.u32 [#allocation7], 4
          %s284 = int_to_ptr.vmem [resolvable:$true] %s283
          %286 = dma.hbm_to_vmem [thread:$0]  %s4, 64, %s284, [#allocation6]
        $region28: #{tpu_custom_call.1} parent=11 // pred_fallthru
          _
        // Predicated region
        $region29: #{tpu_custom_call.1} parent=11 // pred_check
          %p287 = pneg %p153
        $region30: #{tpu_custom_call.1} parent=11 // pred_check_branch
          %289 = sbr.rel (%p287) target = $region32
        $region31: #{tpu_custom_call.1} parent=11 // pred_region
          _
        $region32: #{tpu_custom_call.1} parent=11 // pred_fallthru
          _
        // Predicated region
        $region33: #{tpu_custom_call.1} parent=11 // pred_check
          %p290 = pneg %p174
        $region34: #{tpu_custom_call.1} parent=11 // pred_check_branch
          %292 = sbr.rel (%p290) target = $region36
        $region35: #{tpu_custom_call.1} parent=11 // pred_region
          _
        $region36: #{tpu_custom_call.1} parent=11 // pred_fallthru
          _
        // Predicated region
        $region37: #{tpu_custom_call.1} parent=11 // pred_check
          %p293 = pneg %p195
        $region38: #{tpu_custom_call.1} parent=11 // pred_check_branch
          %295 = sbr.rel (%p293) target = $region40
        $region39: #{tpu_custom_call.1} parent=11 // pred_region
          _
        $region40: #{tpu_custom_call.1} parent=11 // pred_fallthru
          _
        // Predicated region
        $region41: #{tpu_custom_call.1} parent=11 // pred_check
          %p296 = pneg %p216
        $region42: #{tpu_custom_call.1} parent=11 // pred_check_branch
          %298 = sbr.rel (%p296) target = $region44
        $region43: #{tpu_custom_call.1} parent=11 // pred_region
          _
        $region44: #{tpu_custom_call.1} parent=11 // pred_fallthru
          _
      $region12: #{tpu_custom_call.1} parent=5 // pred_fallthru
        _
      %p299 = scmp.lt.s32.totalorder %s22, 4
      // Predicated region
      $region45: #{tpu_custom_call.1} parent=5 // pred_check
        %p300 = pneg %p299
      $region46: #{tpu_custom_call.1} parent=5 // pred_check_branch
        %302 = sbr.rel (%p300) target = $region48
      $region47: #{tpu_custom_call.1} parent=5 // pred_region
        // Predicated region
        $region49: #{tpu_custom_call.1} parent=47 // pred_check
          %p303 = pneg %p42
        $region50: #{tpu_custom_call.1} parent=47 // pred_check_branch
          %305 = sbr.rel (%p303) target = $region52
        $region51: #{tpu_custom_call.1} parent=47 // pred_region
          %s306 = sand.u32 %s32, 1
          %s307 = scalar_lea.sflag [#allocation3], %s306
          %s308 = sand.u32 %s32, 1
          %s309 = smul.addr %s308, 128
          %s310 = scalar_lea.vmem [#allocation2], %s309
          %s311 = smul.u32 8, %s22
          %s313 = ssub.s32 2048, 2048
          %314 = vsyncadd %s307, %s313
          %s315 = smul.addr %s311, 2
          %s316 = smul.addr %s315, 128
          %s317 = scalar_lea.hbm %s0, %s316
          %s318 = sshll.u32 %s310, 4
          %s319 = int_to_ptr.vmem [resolvable:$true] %s318
          %324 = dma.hbm_to_vmem [thread:$0]  %s317, 2048, %s319, %s307, 128, 128, 8
        $region52: #{tpu_custom_call.1} parent=47 // pred_fallthru
          _
      $region48: #{tpu_custom_call.1} parent=5 // pred_fallthru
        _
      %p325 = scmp.le.s32.totalorder 1, %s22
      %p326 = scmp.lt.s32.totalorder %s22, 5
      %p327 = pnand %p325, %p326
      %p328 = pneg %p327
      // Predicated region
      $region53: #{tpu_custom_call.1} parent=5 // pred_check
        _
      $region54: #{tpu_custom_call.1} parent=5 // pred_check_branch
        %330 = sbr.rel (%p327) target = $region56
      $region55: #{tpu_custom_call.1} parent=5 // pred_region
        %s331 = ssub.s32 %s22, 1
        %s332 = sand.u32 %s35, 1
        %s333 = scalar_lea.sflag [#allocation3], %s332
        %s334 = sand.u32 %s35, 1
        %s335 = smul.addr %s334, 128
        %s336 = scalar_lea.vmem [#allocation2], %s335
        // Predicated region
        $region57: #{tpu_custom_call.1} parent=55 // pred_check
          %p337 = pneg %p48
        $region58: #{tpu_custom_call.1} parent=55 // pred_check_branch
          %339 = sbr.rel (%p337) target = $region60
        $region59: #{tpu_custom_call.1} parent=55 // pred_region
          %340 = dma.done %s333, 2048
        $region60: #{tpu_custom_call.1} parent=55 // pred_fallthru
          _
        // Predicated region
        $region61: #{tpu_custom_call.1} parent=55 // pred_check
          %p341 = pneg %p111
        $region62: #{tpu_custom_call.1} parent=55 // pred_check_branch
          %343 = sbr.rel (%p341) target = $region64
        $region63: #{tpu_custom_call.1} parent=55 // pred_region
          %344 = dma.done [#allocation6], 3072
        $region64: #{tpu_custom_call.1} parent=55 // pred_fallthru
          _
        // Predicated region
        $region65: #{tpu_custom_call.1} parent=55 // pred_check
          %p345 = pneg %p132
        $region66: #{tpu_custom_call.1} parent=55 // pred_check_branch
          %347 = sbr.rel (%p345) target = $region68
        $region67: #{tpu_custom_call.1} parent=55 // pred_region
          %348 = dma.done [#allocation6], 64
        $region68: #{tpu_custom_call.1} parent=55 // pred_fallthru
          _
        %s349 = sand.u32 %s35, 1
        %s350 = scalar_lea.sflag [#allocation3], %s349
        %s351 = sand.u32 %s35, 1
        %s352 = smul.addr %s351, 128
        %s353 = scalar_lea.vmem [#allocation2], %s352
        %p354 = pneg %p48
        %p355 = pneg %p45
        %p356 = pneg %p69
        %p357 = pneg %p66
        %p358 = pneg %p90
        %p359 = pneg %p87
        %p360 = pneg %p111
        %p361 = pneg %p108
        %p362 = pneg %p132
        %p363 = pneg %p129
        %p364 = pneg %p153
        %p365 = pneg %p150
        %p366 = pneg %p174
        %p367 = pneg %p171
        %p368 = pneg %p195
        %p369 = pneg %p192
        %p370 = pneg %p216
        %p371 = pneg %p213
        %p372 = pneg %p242
        %p373 = pneg %p239
        %s374 = sand.u32 %s229, 1
        %s375 = scalar_lea.sflag [#allocation4], %s374
        %s376 = sand.u32 %s229, 1
        %s377 = smul.addr %s376, 128
        %s378 = scalar_lea.vmem [#allocation8], %s377
        %s379 = smul.u32 8, %s27
        %s380 = smul.u32 8, %s27
        %v382 = vld [vmem:[%s336] sm:$0xff]
        %v383 = vld [vmem:[%s336 + $0x8] sm:$0xff]
        %v384 = vld [vmem:[%s336 + $0x10] sm:$0xff]
        %v385 = vld [vmem:[%s336 + $0x18] sm:$0xff]
        %v386 = vld [vmem:[%s336 + $0x20] sm:$0xff]
        %v387 = vld [vmem:[%s336 + $0x28] sm:$0xff]
        %v388 = vld [vmem:[%s336 + $0x30] sm:$0xff]
        %v389 = vld [vmem:[%s336 + $0x38] sm:$0xff]
        %v390 = vld [vmem:[%s336 + $0x40] sm:$0xff]
        %v391 = vld [vmem:[%s336 + $0x48] sm:$0xff]
        %v392 = vld [vmem:[%s336 + $0x50] sm:$0xff]
        %v393 = vld [vmem:[%s336 + $0x58] sm:$0xff]
        %v394 = vld [vmem:[%s336 + $0x60] sm:$0xff]
        %v395 = vld [vmem:[%s336 + $0x68] sm:$0xff]
        %v396 = vld [vmem:[%s336 + $0x70] sm:$0xff]
        %v397 = vld [vmem:[%s336 + $0x78] sm:$0xff]
        %vm414 = vcmask 1040384
        %v415 = vrot.slane %v382, 7
        %v416 = vrot.slane %v383, 7
        %v417 = vsel %vm414, %v415, %v416
        %v418 = vrot.slane %v384, 7
        %v419 = vrot.slane %v385, 7
        %v420 = vsel %vm414, %v418, %v419
        %v421 = vrot.slane %v386, 7
        %v422 = vrot.slane %v387, 7
        %v423 = vsel %vm414, %v421, %v422
        %v424 = vrot.slane %v388, 7
        %v425 = vrot.slane %v389, 7
        %v426 = vsel %vm414, %v424, %v425
        %v427 = vrot.slane %v390, 7
        %v428 = vrot.slane %v391, 7
        %v429 = vsel %vm414, %v427, %v428
        %v430 = vrot.slane %v392, 7
        %v431 = vrot.slane %v393, 7
        %v432 = vsel %vm414, %v430, %v431
        %v433 = vrot.slane %v394, 7
        %v434 = vrot.slane %v395, 7
        %v435 = vsel %vm414, %v433, %v434
        %v436 = vrot.slane %v396, 7
        %v437 = vrot.slane %v397, 7
        %v438 = vsel %vm414, %v436, %v437
        %v463 = vsel %vm414, 0.0, %v415
        %v464 = vsel %vm414, 0.0, %v418
        %v465 = vsel %vm414, 0.0, %v421
        %v466 = vsel %vm414, 0.0, %v424
        %v467 = vsel %vm414, 0.0, %v427
        %v468 = vsel %vm414, 0.0, %v430
        %v469 = vsel %vm414, 0.0, %v433
        %v470 = vsel %vm414, 0.0, %v436
        %v471 = vsel %vm414, %v416, 0.0
        %v472 = vsel %vm414, %v419, 0.0
        %v473 = vsel %vm414, %v422, 0.0
        %v474 = vsel %vm414, %v425, 0.0
        %v475 = vsel %vm414, %v428, 0.0
        %v476 = vsel %vm414, %v431, 0.0
        %v477 = vsel %vm414, %v434, 0.0
        %v478 = vsel %vm414, %v437, 0.0
        %479 = vrot.lane.b32.xlu0 %v382, 64
        %v480 = vpop.permute.xlu0 %479
        %481 = vrot.lane.b32.xlu0 %v383, 64
        %v482 = vpop.permute.xlu0 %481
        %483 = vrot.lane.b32.xlu0 %v384, 64
        %v484 = vpop.permute.xlu0 %483
        %485 = vrot.lane.b32.xlu0 %v385, 64
        %v486 = vpop.permute.xlu0 %485
        %487 = vrot.lane.b32.xlu0 %v386, 64
        %v488 = vpop.permute.xlu0 %487
        %489 = vrot.lane.b32.xlu0 %v387, 64
        %v490 = vpop.permute.xlu0 %489
        %491 = vrot.lane.b32.xlu0 %v388, 64
        %v492 = vpop.permute.xlu0 %491
        %493 = vrot.lane.b32.xlu0 %v389, 64
        %v494 = vpop.permute.xlu0 %493
        %495 = vrot.lane.b32.xlu0 %v390, 64
        %v496 = vpop.permute.xlu0 %495
        %497 = vrot.lane.b32.xlu0 %v391, 64
        %v498 = vpop.permute.xlu0 %497
        %499 = vrot.lane.b32.xlu0 %v392, 64
        %v500 = vpop.permute.xlu0 %499
        %501 = vrot.lane.b32.xlu0 %v393, 64
        %v502 = vpop.permute.xlu0 %501
        %503 = vrot.lane.b32.xlu0 %v394, 64
        %v504 = vpop.permute.xlu0 %503
        %505 = vrot.lane.b32.xlu0 %v395, 64
        %v506 = vpop.permute.xlu0 %505
        %507 = vrot.lane.b32.xlu0 %v396, 64
        %v508 = vpop.permute.xlu0 %507
        %509 = vrot.lane.b32.xlu0 %v397, 64
        %v510 = vpop.permute.xlu0 %509
        %vm543 = vcmask 1045504
        %v544 = vrot.slane %v463, 2
        %v545 = vrot.slane %v417, 2
        %v546 = vsel %vm543, %v544, %v545
        %v547 = vrot.slane %v471, 2
        %v548 = vsel %vm543, %v545, %v547
        %v549 = vrot.slane %v464, 2
        %v550 = vrot.slane %v420, 2
        %v551 = vsel %vm543, %v549, %v550
        %v552 = vrot.slane %v472, 2
        %v553 = vsel %vm543, %v550, %v552
        %v554 = vrot.slane %v465, 2
        %v555 = vrot.slane %v423, 2
        %v556 = vsel %vm543, %v554, %v555
        %v557 = vrot.slane %v473, 2
        %v558 = vsel %vm543, %v555, %v557
        %v559 = vrot.slane %v466, 2
        %v560 = vrot.slane %v426, 2
        %v561 = vsel %vm543, %v559, %v560
        %v562 = vrot.slane %v474, 2
        %v563 = vsel %vm543, %v560, %v562
        %v564 = vrot.slane %v467, 2
        %v565 = vrot.slane %v429, 2
        %v566 = vsel %vm543, %v564, %v565
        %v567 = vrot.slane %v475, 2
        %v568 = vsel %vm543, %v565, %v567
        %v569 = vrot.slane %v468, 2
        %v570 = vrot.slane %v432, 2
        %v571 = vsel %vm543, %v569, %v570
        %v572 = vrot.slane %v476, 2
        %v573 = vsel %vm543, %v570, %v572
        %v574 = vrot.slane %v469, 2
        %v575 = vrot.slane %v435, 2
        %v576 = vsel %vm543, %v574, %v575
        %v577 = vrot.slane %v477, 2
        %v578 = vsel %vm543, %v575, %v577
        %v579 = vrot.slane %v470, 2
        %v580 = vrot.slane %v438, 2
        %v581 = vsel %vm543, %v579, %v580
        %v582 = vrot.slane %v478, 2
        %v583 = vsel %vm543, %v580, %v582
        %vm600 = vcmask 523264
        %v601 = vsel %vm600, %v463, %v480
        %v602 = vsel %vm600, %v417, %v482
        %v603 = vsel %vm600, %v464, %v484
        %v604 = vsel %vm600, %v420, %v486
        %v605 = vsel %vm600, %v465, %v488
        %v606 = vsel %vm600, %v423, %v490
        %v607 = vsel %vm600, %v466, %v492
        %v608 = vsel %vm600, %v426, %v494
        %v609 = vsel %vm600, %v467, %v496
        %v610 = vsel %vm600, %v429, %v498
        %v611 = vsel %vm600, %v468, %v500
        %v612 = vsel %vm600, %v432, %v502
        %v613 = vsel %vm600, %v469, %v504
        %v614 = vsel %vm600, %v435, %v506
        %v615 = vsel %vm600, %v470, %v508
        %v616 = vsel %vm600, %v438, %v510
        %v617 = vpack.c.bf16 %v602, %v601
        %v618 = vpack.c.bf16 %v548, %v546
        %v619 = vpack.c.bf16 %v604, %v603
        %v620 = vpack.c.bf16 %v553, %v551
        %v621 = vpack.c.bf16 %v606, %v605
        %v622 = vpack.c.bf16 %v558, %v556
        %v623 = vpack.c.bf16 %v608, %v607
        %v624 = vpack.c.bf16 %v563, %v561
        %v625 = vpack.c.bf16 %v610, %v609
        %v626 = vpack.c.bf16 %v568, %v566
        %v627 = vpack.c.bf16 %v612, %v611
        %v628 = vpack.c.bf16 %v573, %v571
        %v629 = vpack.c.bf16 %v614, %v613
        %v630 = vpack.c.bf16 %v578, %v576
        %v631 = vpack.c.bf16 %v616, %v615
        %v632 = vpack.c.bf16 %v583, %v581
        %v633 = vld [vmem:[%s1] sm:$0xf]
        %v634 = vld [vmem:[%s1 + $0x4] sm:$0xf]
        %v635 = vld [vmem:[%s1 + $0x8] sm:$0xf]
        %v636 = vld [vmem:[%s1 + $0xc] sm:$0xf]
        %v637 = vld [vmem:[%s1 + $0x10] sm:$0xf]
        %v638 = vld [vmem:[%s1 + $0x14] sm:$0xf]
        %v639 = vld [vmem:[%s1 + $0x18] sm:$0xf]
        %v640 = vld [vmem:[%s1 + $0x1c] sm:$0xf]
        %v641 = vld [vmem:[%s1 + $0x20] sm:$0xf]
        %v642 = vld [vmem:[%s1 + $0x24] sm:$0xf]
        %v643 = vld [vmem:[%s1 + $0x28] sm:$0xf]
        %v644 = vld [vmem:[%s1 + $0x2c] sm:$0xf]
        %v645 = vld [vmem:[%s1 + $0x30] sm:$0xf]
        %v646 = vld [vmem:[%s1 + $0x34] sm:$0xf]
        %v647 = vld [vmem:[%s1 + $0x38] sm:$0xf]
        %v648 = vld [vmem:[%s1 + $0x3c] sm:$0xf]
        %v649 = vld [vmem:[%s1 + $0x40] sm:$0xf]
        %v650 = vld [vmem:[%s1 + $0x44] sm:$0xf]
        %v651 = vld [vmem:[%s1 + $0x48] sm:$0xf]
        %v652 = vld [vmem:[%s1 + $0x4c] sm:$0xf]
        %v653 = vld [vmem:[%s1 + $0x50] sm:$0xf]
        %v654 = vld [vmem:[%s1 + $0x54] sm:$0xf]
        %v655 = vld [vmem:[%s1 + $0x58] sm:$0xf]
        %v656 = vld [vmem:[%s1 + $0x5c] sm:$0xf]
        %v657 = vld [vmem:[%s2] sm:$0x1]
        %v658 = vlaneseq
        %v659 = vshrl.u32 %v658, 7
        %v660 = vsub.s32 0, %v659
        %v661 = vrot.slane %v657, %v660
        %v686 = vunpack.c.l.b16 %v633
        %v687 = vunpack.c.l.b16 %v634
        %v688 = vunpack.c.l.b16 %v635
        %v689 = vunpack.c.l.b16 %v636
        %v690 = vunpack.c.l.b16 %v637
        %v691 = vunpack.c.l.b16 %v638
        %v692 = vunpack.c.l.b16 %v639
        %v693 = vunpack.c.l.b16 %v640
        %v694 = vunpack.c.l.b16 %v641
        %v695 = vunpack.c.l.b16 %v642
        %v696 = vunpack.c.l.b16 %v643
        %v697 = vunpack.c.l.b16 %v644
        %v698 = vunpack.c.l.b16 %v645
        %v699 = vunpack.c.l.b16 %v646
        %v700 = vunpack.c.l.b16 %v647
        %v701 = vunpack.c.l.b16 %v648
        %v702 = vunpack.c.l.b16 %v649
        %v703 = vunpack.c.l.b16 %v650
        %v704 = vunpack.c.l.b16 %v651
        %v705 = vunpack.c.l.b16 %v652
        %v706 = vunpack.c.l.b16 %v653
        %v707 = vunpack.c.l.b16 %v654
        %v708 = vunpack.c.l.b16 %v655
        %v709 = vunpack.c.l.b16 %v656
        %v710 = vpack.c.b16 %v687, %v686
        %v711 = vpack.c.b16 %v689, %v688
        %v712 = vpack.c.b16 %v691, %v690
        %v713 = vpack.c.b16 %v693, %v692
        %v714 = vpack.c.b16 %v695, %v694
        %v715 = vpack.c.b16 %v697, %v696
        %v716 = vpack.c.b16 %v699, %v698
        %v717 = vpack.c.b16 %v701, %v700
        %v718 = vpack.c.b16 %v703, %v702
        %v719 = vpack.c.b16 %v705, %v704
        %v720 = vpack.c.b16 %v707, %v706
        %v721 = vpack.c.b16 %v709, %v708
        %v735 = vsel %vm600, %v618, 0
        %v738 = vsel %vm600, %v620, 0
        %v741 = vsel %vm600, %v622, 0
        %v744 = vsel %vm600, %v624, 0
        %v747 = vsel %vm600, %v626, 0
        %v750 = vsel %vm600, %v628, 0
        %v753 = vsel %vm600, %v630, 0
        %v756 = vsel %vm600, %v632, 0
        %758 = vmatprep.subr.bf16.mxu0 0
        %759 = vmatpush1.bf16.msra.mxu0 %v710
        %760 = vmatprep.subr.bf16.mxu0 0
        %761 = vmatpush1.bf16.msra.mxu0 %v711
        %762 = vmatprep.subr.bf16.mxu0 0
        %763 = vmatpush1.bf16.msra.mxu0 %v712
        %764 = vmatprep.subr.bf16.mxu0 0
        %765 = vmatpush1.bf16.msra.mxu0 %v713
        %766 = vmatprep.subr.bf16.mxu0 0
        %767 = vmatpush1.bf16.msra.mxu0 %v714
        %768 = vmatprep.subr.bf16.mxu0 0
        %769 = vmatpush1.bf16.msra.mxu0 %v715
        %770 = vmatprep.subr.bf16.mxu0 0
        %771 = vmatpush1.bf16.msra.mxu0 %v716
        %772 = vmatprep.subr.bf16.mxu0 0
        %773 = vmatpush1.bf16.msra.mxu0 %v717
        %774 = vmatprep.subr.bf16.mxu0 0
        %775 = vmatpush1.bf16.msra.mxu0 %v718
        %776 = vmatprep.subr.bf16.mxu0 0
        %777 = vmatpush1.bf16.msra.mxu0 %v719
        %778 = vmatprep.subr.bf16.mxu0 0
        %779 = vmatpush1.bf16.msra.mxu0 %v720
        %780 = vmatprep.subr.bf16.mxu0 0
        %781 = vmatpush1.bf16.msra.mxu0 %v721
        %782 = vmatprep.subr.bf16.mxu0 0
        %783 = vmatpush1.bf16.msra.mxu0 0
        %784 = vmatprep.subr.bf16.mxu0 0
        %785 = vmatpush1.bf16.msra.mxu0 0
        %786 = vmatprep.subr.bf16.mxu0 0
        %787 = vmatpush1.bf16.msra.mxu0 0
        %788 = vmatprep.subr.bf16.mxu0 0
        %789 = vmatpush1.bf16.msra.mxu0 0
        %790 = vmatprep.mubr.bf16.mxu0 %v735
        %791 = vmatmul.mubr.bf16.gmra.mrb[0].mxu0 %v617
        %v792 = vpop.f32.mrb[0].mxu0
        %v793 = vadd.f32 %v661, %v792
        %v794 = vpop.f32.mrb[0].mxu0
        %v795 = vpop.f32.mrb[0].mxu0
        %v796 = vadd.f32 %v661, %v795
        %v797 = vpop.f32.mrb[0].mxu0
        %798 = vmatprep.mubr.bf16.mxu0 %v738
        %799 = vmatmul.mubr.bf16.gmra.mrb[0].mxu0 %v619
        %v800 = vpop.f32.mrb[0].mxu0
        %v801 = vadd.f32 %v661, %v800
        %v802 = vpop.f32.mrb[0].mxu0
        %v803 = vpop.f32.mrb[0].mxu0
        %v804 = vadd.f32 %v661, %v803
        %v805 = vpop.f32.mrb[0].mxu0
        %806 = vmatprep.mubr.bf16.mxu0 %v741
        %807 = vmatmul.mubr.bf16.gmra.mrb[0].mxu0 %v621
        %v808 = vpop.f32.mrb[0].mxu0
        %v809 = vadd.f32 %v661, %v808
        %v810 = vpop.f32.mrb[0].mxu0
        %v811 = vpop.f32.mrb[0].mxu0
        %v812 = vadd.f32 %v661, %v811
        %v813 = vpop.f32.mrb[0].mxu0
        %814 = vmatprep.mubr.bf16.mxu0 %v744
        %815 = vmatmul.mubr.bf16.gmra.mrb[0].mxu0 %v623
        %v816 = vpop.f32.mrb[0].mxu0
        %v817 = vadd.f32 %v661, %v816
        %v818 = vpop.f32.mrb[0].mxu0
        %v819 = vpop.f32.mrb[0].mxu0
        %v820 = vadd.f32 %v661, %v819
        %v821 = vpop.f32.mrb[0].mxu0
        %822 = vmatprep.mubr.bf16.mxu0 %v747
        %823 = vmatmul.mubr.bf16.gmra.mrb[0].mxu0 %v625
        %v824 = vpop.f32.mrb[0].mxu0
        %v825 = vadd.f32 %v661, %v824
        %v826 = vpop.f32.mrb[0].mxu0
        %v827 = vpop.f32.mrb[0].mxu0
        %v828 = vadd.f32 %v661, %v827
        %v829 = vpop.f32.mrb[0].mxu0
        %830 = vmatprep.mubr.bf16.mxu0 %v750
        %831 = vmatmul.mubr.bf16.gmra.mrb[0].mxu0 %v627
        %v832 = vpop.f32.mrb[0].mxu0
        %v833 = vadd.f32 %v661, %v832
        %v834 = vpop.f32.mrb[0].mxu0
        %v835 = vpop.f32.mrb[0].mxu0
        %v836 = vadd.f32 %v661, %v835
        %v837 = vpop.f32.mrb[0].mxu0
        %838 = vmatprep.mubr.bf16.mxu0 %v753
        %839 = vmatmul.mubr.bf16.gmra.mrb[0].mxu0 %v629
        %v840 = vpop.f32.mrb[0].mxu0
        %v841 = vadd.f32 %v661, %v840
        %v842 = vpop.f32.mrb[0].mxu0
        %v843 = vpop.f32.mrb[0].mxu0
        %v844 = vadd.f32 %v661, %v843
        %v845 = vpop.f32.mrb[0].mxu0
        %846 = vmatprep.mubr.bf16.mxu0 %v756
        %847 = vmatmul.mubr.bf16.gmra.mrb[0].mxu0 %v631
        %v848 = vpop.f32.mrb[0].mxu0
        %v849 = vadd.f32 %v661, %v848
        %v850 = vpop.f32.mrb[0].mxu0
        %v851 = vpop.f32.mrb[0].mxu0
        %v852 = vadd.f32 %v661, %v851
        %v853 = vpop.f32.mrb[0].mxu0
        %854 = vdwg.mxu0
        %v855 = vadd.f32 %v793, %v796
        %v856 = vrot.slane %v855, 4
        %v857 = vadd.f32 %v855, %v856
        %v858 = vrot.slane %v857, 2
        %v859 = vadd.f32 %v857, %v858
        %v860 = vrot.slane %v859, 1
        %v861 = vadd.f32 %v859, %v860
        %v862 = vadd.f32 %v801, %v804
        %v863 = vrot.slane %v862, 4
        %v864 = vadd.f32 %v862, %v863
        %v865 = vrot.slane %v864, 2
        %v866 = vadd.f32 %v864, %v865
        %v867 = vrot.slane %v866, 1
        %v868 = vadd.f32 %v866, %v867
        %v869 = vadd.f32 %v809, %v812
        %v870 = vrot.slane %v869, 4
        %v871 = vadd.f32 %v869, %v870
        %v872 = vrot.slane %v871, 2
        %v873 = vadd.f32 %v871, %v872
        %v874 = vrot.slane %v873, 1
        %v875 = vadd.f32 %v873, %v874
        %v876 = vadd.f32 %v817, %v820
        %v877 = vrot.slane %v876, 4
        %v878 = vadd.f32 %v876, %v877
        %v879 = vrot.slane %v878, 2
        %v880 = vadd.f32 %v878, %v879
        %v881 = vrot.slane %v880, 1
        %v882 = vadd.f32 %v880, %v881
        %v883 = vadd.f32 %v825, %v828
        %v884 = vrot.slane %v883, 4
        %v885 = vadd.f32 %v883, %v884
        %v886 = vrot.slane %v885, 2
        %v887 = vadd.f32 %v885, %v886
        %v888 = vrot.slane %v887, 1
        %v889 = vadd.f32 %v887, %v888
        %v890 = vadd.f32 %v833, %v836
        %v891 = vrot.slane %v890, 4
        %v892 = vadd.f32 %v890, %v891
        %v893 = vrot.slane %v892, 2
        %v894 = vadd.f32 %v892, %v893
        %v895 = vrot.slane %v894, 1
        %v896 = vadd.f32 %v894, %v895
        %v897 = vadd.f32 %v841, %v844
        %v898 = vrot.slane %v897, 4
        %v899 = vadd.f32 %v897, %v898
        %v900 = vrot.slane %v899, 2
        %v901 = vadd.f32 %v899, %v900
        %v902 = vrot.slane %v901, 1
        %v903 = vadd.f32 %v901, %v902
        %v904 = vadd.f32 %v849, %v852
        %v905 = vrot.slane %v904, 4
        %v906 = vadd.f32 %v904, %v905
        %v907 = vrot.slane %v906, 2
        %v908 = vadd.f32 %v906, %v907
        %v909 = vrot.slane %v908, 1
        %v910 = vadd.f32 %v908, %v909
        %v911 = vmul.f32 %v793, %v793
        %v912 = vmul.f32 %v796, %v796
        %v913 = vmul.f32 %v801, %v801
        %v914 = vmul.f32 %v804, %v804
        %v915 = vmul.f32 %v809, %v809
        %v916 = vmul.f32 %v812, %v812
        %v917 = vmul.f32 %v817, %v817
        %v918 = vmul.f32 %v820, %v820
        %v919 = vmul.f32 %v825, %v825
        %v920 = vmul.f32 %v828, %v828
        %v921 = vmul.f32 %v833, %v833
        %v922 = vmul.f32 %v836, %v836
        %v923 = vmul.f32 %v841, %v841
        %v924 = vmul.f32 %v844, %v844
        %v925 = vmul.f32 %v849, %v849
        %v926 = vmul.f32 %v852, %v852
        %v927 = vadd.f32 %v911, %v912
        %v928 = vrot.slane %v927, 4
        %v929 = vadd.f32 %v927, %v928
        %v930 = vrot.slane %v929, 2
        %v931 = vadd.f32 %v929, %v930
        %v932 = vrot.slane %v931, 1
        %v933 = vadd.f32 %v931, %v932
        %v934 = vadd.f32 %v913, %v914
        %v935 = vrot.slane %v934, 4
        %v936 = vadd.f32 %v934, %v935
        %v937 = vrot.slane %v936, 2
        %v938 = vadd.f32 %v936, %v937
        %v939 = vrot.slane %v938, 1
        %v940 = vadd.f32 %v938, %v939
        %v941 = vadd.f32 %v915, %v916
        %v942 = vrot.slane %v941, 4
        %v943 = vadd.f32 %v941, %v942
        %v944 = vrot.slane %v943, 2
        %v945 = vadd.f32 %v943, %v944
        %v946 = vrot.slane %v945, 1
        %v947 = vadd.f32 %v945, %v946
        %v948 = vadd.f32 %v917, %v918
        %v949 = vrot.slane %v948, 4
        %v950 = vadd.f32 %v948, %v949
        %v951 = vrot.slane %v950, 2
        %v952 = vadd.f32 %v950, %v951
        %v953 = vrot.slane %v952, 1
        %v954 = vadd.f32 %v952, %v953
        %v955 = vadd.f32 %v919, %v920
        %v956 = vrot.slane %v955, 4
        %v957 = vadd.f32 %v955, %v956
        %v958 = vrot.slane %v957, 2
        %v959 = vadd.f32 %v957, %v958
        %v960 = vrot.slane %v959, 1
        %v961 = vadd.f32 %v959, %v960
        %v962 = vadd.f32 %v921, %v922
        %v963 = vrot.slane %v962, 4
        %v964 = vadd.f32 %v962, %v963
        %v965 = vrot.slane %v964, 2
        %v966 = vadd.f32 %v964, %v965
        %v967 = vrot.slane %v966, 1
        %v968 = vadd.f32 %v966, %v967
        %v969 = vadd.f32 %v923, %v924
        %v970 = vrot.slane %v969, 4
        %v971 = vadd.f32 %v969, %v970
        %v972 = vrot.slane %v971, 2
        %v973 = vadd.f32 %v971, %v972
        %v974 = vrot.slane %v973, 1
        %v975 = vadd.f32 %v973, %v974
        %v976 = vadd.f32 %v925, %v926
        %v977 = vrot.slane %v976, 4
        %v978 = vadd.f32 %v976, %v977
        %v979 = vrot.slane %v978, 2
        %v980 = vadd.f32 %v978, %v979
        %v981 = vrot.slane %v980, 1
        %v982 = vadd.f32 %v980, %v981
        %vm991 = vcmask 1041409
        %v992 = vsel %vm991, %v868, %v861
        %vm993 = vcmask 1042434
        %v994 = vsel %vm993, %v875, %v992
        %vm995 = vcmask 1043459
        %v996 = vsel %vm995, %v882, %v994
        %vm997 = vcmask 1044484
        %v998 = vsel %vm997, %v889, %v996
        %vm999 = vcmask 1045509
        %v1000 = vsel %vm999, %v896, %v998
        %vm1001 = vcmask 1046534
        %v1002 = vsel %vm1001, %v903, %v1000
        %vm1003 = vcmask 1047559
        %v1004 = vsel %vm1003, %v910, %v1002
        %v1014 = vsel %vm991, %v940, %v933
        %v1015 = vsel %vm993, %v947, %v1014
        %v1016 = vsel %vm995, %v954, %v1015
        %v1017 = vsel %vm997, %v961, %v1016
        %v1018 = vsel %vm999, %v968, %v1017
        %v1019 = vsel %vm1001, %v975, %v1018
        %v1020 = vsel %vm1003, %v982, %v1019
        %v1022 = vld [vmem:[%s7] sm:$0xff]
        %v1023 = vld [vmem:[%s7 + $0x8] sm:$0xff]
        %v1024 = vld [vmem:[%s7 + $0x10] sm:$0xff]
        %v1025 = vld [vmem:[%s7 + $0x18] sm:$0xff]
        %v1026 = vld [vmem:[%s7 + $0x20] sm:$0xff]
        %v1027 = vld [vmem:[%s7 + $0x28] sm:$0xff]
        %v1028 = vld [vmem:[%s7 + $0x30] sm:$0xff]
        %v1029 = vld [vmem:[%s7 + $0x38] sm:$0xff]
        %v1030 = vld [vmem:[%s7 + $0x40] sm:$0xff]
        %v1031 = vld [vmem:[%s7 + $0x48] sm:$0xff]
        %v1032 = vld [vmem:[%s7 + $0x50] sm:$0xff]
        %v1033 = vld [vmem:[%s7 + $0x58] sm:$0xff]
        %v1034 = vld [vmem:[%s7 + $0x60] sm:$0xff]
        %v1035 = vld [vmem:[%s7 + $0x68] sm:$0xff]
        %v1036 = vld [vmem:[%s7 + $0x70] sm:$0xff]
        %v1037 = vld [vmem:[%s7 + $0x78] sm:$0xff]
        %1038 = vmatprep.subr.mxu0 0.0
        %1039 = vmatpush1.msra.mxu0 %v1022
        %1040 = vmatprep.subr.mxu0 0.0
        %1041 = vmatpush1.msra.mxu0 %v1023
        %1042 = vmatprep.subr.mxu0 0.0
        %1043 = vmatpush1.msra.mxu0 %v1024
        %1044 = vmatprep.subr.mxu0 0.0
        %1045 = vmatpush1.msra.mxu0 %v1025
        %1046 = vmatprep.subr.mxu0 0.0
        %1047 = vmatpush1.msra.mxu0 %v1026
        %1048 = vmatprep.subr.mxu0 0.0
        %1049 = vmatpush1.msra.mxu0 %v1027
        %1050 = vmatprep.subr.mxu0 0.0
        %1051 = vmatpush1.msra.mxu0 %v1028
        %1052 = vmatprep.subr.mxu0 0.0
        %1053 = vmatpush1.msra.mxu0 %v1029
        %1054 = vmatprep.subr.mxu0 0.0
        %1055 = vmatpush1.msra.mxu0 %v1030
        %1056 = vmatprep.subr.mxu0 0.0
        %1057 = vmatpush1.msra.mxu0 %v1031
        %1058 = vmatprep.subr.mxu0 0.0
        %1059 = vmatpush1.msra.mxu0 %v1032
        %1060 = vmatprep.subr.mxu0 0.0
        %1061 = vmatpush1.msra.mxu0 %v1033
        %1062 = vmatprep.subr.mxu0 0.0
        %1063 = vmatpush1.msra.mxu0 %v1034
        %1064 = vmatprep.subr.mxu0 0.0
        %1065 = vmatpush1.msra.mxu0 %v1035
        %1066 = vmatprep.subr.mxu0 0.0
        %1067 = vmatpush1.msra.mxu0 %v1036
        %1068 = vmatprep.subr.mxu0 0.0
        %1069 = vmatpush1.msra.mxu0 %v1037
        %1070 = vmatprep.subr.mxu0 0.0
        %1071 = vmatpush1.msra.mxu0 0.0
        %1072 = vmatprep.subr.mxu0 0.0
        %1073 = vmatpush1.msra.mxu0 0.0
        %1074 = vmatprep.subr.mxu0 0.0
        %1075 = vmatpush1.msra.mxu0 0.0
        %1076 = vmatprep.subr.mxu0 0.0
        %1077 = vmatpush1.msra.mxu0 0.0
        %1078 = vmatprep.subr.mxu0 0.0
        %1079 = vmatpush1.msra.mxu0 0.0
        %1080 = vmatprep.subr.mxu0 0.0
        %1081 = vmatpush1.msra.mxu0 0.0
        %1082 = vmatprep.subr.mxu0 0.0
        %1083 = vmatpush1.msra.mxu0 0.0
        %1084 = vmatprep.subr.mxu0 0.0
        %1085 = vmatpush1.msra.mxu0 0.0
        %1086 = vmatprep.subr.mxu0 0.0
        %1087 = vmatpush1.msra.mxu0 0.0
        %1088 = vmatprep.subr.mxu0 0.0
        %1089 = vmatpush1.msra.mxu0 0.0
        %1090 = vmatprep.subr.mxu0 0.0
        %1091 = vmatpush1.msra.mxu0 0.0
        %1092 = vmatprep.subr.mxu0 0.0
        %1093 = vmatpush1.msra.mxu0 0.0
        %1094 = vmatprep.subr.mxu0 0.0
        %1095 = vmatpush1.msra.mxu0 0.0
        %1096 = vmatprep.subr.mxu0 0.0
        %1097 = vmatpush1.msra.mxu0 0.0
        %1098 = vmatprep.subr.mxu0 0.0
        %1099 = vmatpush1.msra.mxu0 0.0
        %1100 = vmatprep.subr.mxu0 0.0
        %1101 = vmatpush1.msra.mxu0 0.0
        %1102 = vmatprep.mubr.f32.mxu0 0.0
        %1103 = vmatmul.mubr.f32.gmra.mrb[0].mxu0 %v1004
        %v1104 = vpop.f32.mrb[0].mxu0
        %v1105 = vadd.f32 0.0, %v1104
        %v1106 = vpop.f32.mrb[0].mxu0
        %1107 = vmatprep.mubr.f32.mxu0 0.0
        %1108 = vmatmul.mubr.f32.gmra.mrb[0].mxu0 %v1020
        %v1109 = vpop.f32.mrb[0].mxu0
        %v1110 = vadd.f32 0.0, %v1109
        %v1111 = vpop.f32.mrb[0].mxu0
        %1112 = vdwg.mxu0
        %v1113 = vmul.f32 %v1105, 0.00390625
        %v1114 = vmul.f32 %v1110, 0.00390625
        %v1115 = vmul.f32 %v1113, %v1113
        %v1116 = vsub.f32 %v1114, %v1115
        %v1117 = vmax.f32 %v1116, 0.0
        %v1118 = vld [vmem:[%s8] sm:$0xff]
        %vm1119 = vcmask 64512
        %v1121 = vsel %vm1119, %v1113, 0
        %v1124 = vsel %vm1119, %v1117, 0
        %1126 = vmatprep.subr.mxu0 0.0
        %1127 = vmatpush1.msra.mxu0 %v1118
        %1128 = vmatprep.subr.mxu0 0.0
        %1129 = vmatpush1.msra.mxu0 0.0
        %1130 = vmatprep.subr.mxu0 0.0
        %1131 = vmatpush1.msra.mxu0 0.0
        %1132 = vmatprep.subr.mxu0 0.0
        %1133 = vmatpush1.msra.mxu0 0.0
        %1134 = vmatprep.subr.mxu0 0.0
        %1135 = vmatpush1.msra.mxu0 0.0
        %1136 = vmatprep.subr.mxu0 0.0
        %1137 = vmatpush1.msra.mxu0 0.0
        %1138 = vmatprep.subr.mxu0 0.0
        %1139 = vmatpush1.msra.mxu0 0.0
        %1140 = vmatprep.subr.mxu0 0.0
        %1141 = vmatpush1.msra.mxu0 0.0
        %1142 = vmatprep.subr.mxu0 0.0
        %1143 = vmatpush1.msra.mxu0 0.0
        %1144 = vmatprep.subr.mxu0 0.0
        %1145 = vmatpush1.msra.mxu0 0.0
        %1146 = vmatprep.subr.mxu0 0.0
        %1147 = vmatpush1.msra.mxu0 0.0
        %1148 = vmatprep.subr.mxu0 0.0
        %1149 = vmatpush1.msra.mxu0 0.0
        %1150 = vmatprep.subr.mxu0 0.0
        %1151 = vmatpush1.msra.mxu0 0.0
        %1152 = vmatprep.subr.mxu0 0.0
        %1153 = vmatpush1.msra.mxu0 0.0
        %1154 = vmatprep.subr.mxu0 0.0
        %1155 = vmatpush1.msra.mxu0 0.0
        %1156 = vmatprep.subr.mxu0 0.0
        %1157 = vmatpush1.msra.mxu0 0.0
        %1158 = vmatprep.subr.mxu0 0.0
        %1159 = vmatpush1.msra.mxu0 0.0
        %1160 = vmatprep.subr.mxu0 0.0
        %1161 = vmatpush1.msra.mxu0 0.0
        %1162 = vmatprep.subr.mxu0 0.0
        %1163 = vmatpush1.msra.mxu0 0.0
        %1164 = vmatprep.subr.mxu0 0.0
        %1165 = vmatpush1.msra.mxu0 0.0
        %1166 = vmatprep.subr.mxu0 0.0
        %1167 = vmatpush1.msra.mxu0 0.0
        %1168 = vmatprep.subr.mxu0 0.0
        %1169 = vmatpush1.msra.mxu0 0.0
        %1170 = vmatprep.subr.mxu0 0.0
        %1171 = vmatpush1.msra.mxu0 0.0
        %1172 = vmatprep.subr.mxu0 0.0
        %1173 = vmatpush1.msra.mxu0 0.0
        %1174 = vmatprep.subr.mxu0 0.0
        %1175 = vmatpush1.msra.mxu0 0.0
        %1176 = vmatprep.subr.mxu0 0.0
        %1177 = vmatpush1.msra.mxu0 0.0
        %1178 = vmatprep.subr.mxu0 0.0
        %1179 = vmatpush1.msra.mxu0 0.0
        %1180 = vmatprep.subr.mxu0 0.0
        %1181 = vmatpush1.msra.mxu0 0.0
        %1182 = vmatprep.subr.mxu0 0.0
        %1183 = vmatpush1.msra.mxu0 0.0
        %1184 = vmatprep.subr.mxu0 0.0
        %1185 = vmatpush1.msra.mxu0 0.0
        %1186 = vmatprep.subr.mxu0 0.0
        %1187 = vmatpush1.msra.mxu0 0.0
        %1188 = vmatprep.subr.mxu0 0.0
        %1189 = vmatpush1.msra.mxu0 0.0
        %1190 = vmatprep.mubr.f32.mxu0 0.0
        %1191 = vmatmul.mubr.f32.gmra.mrb[0].mxu0 %v1121
        %v1192 = vpop.f32.mrb[0].mxu0
        %v1193 = vadd.f32 0.0, %v1192
        %v1194 = vpop.f32.mrb[0].mxu0
        %1195 = vmatprep.mubr.f32.mxu0 0.0
        %1196 = vmatmul.mubr.f32.gmra.mrb[0].mxu0 %v1124
        %v1197 = vpop.f32.mrb[0].mxu0
        %v1198 = vadd.f32 0.0, %v1197
        %v1199 = vpop.f32.mrb[0].mxu0
        %1200 = vdwg.mxu0
        %v1202 = vcombine.high %v1193, %v1193
        %v1204 = vunpack.c.l.s4 1966171168
        %v1205 = vunpack.c.0.s8 %v1204
        %v1206 = vlaneseq
        %v1207 = vshrl.u32 %v1206, 7
        %v1208 = vsub.s32 %v1205, %v1207
        %v1209 = vrot.slane %v1193, %v1208
        %v1211 = vunpack.c.l.s4 1966171168
        %v1212 = vunpack.c.0.s8 %v1211
        %v1213 = vlaneseq
        %v1214 = vshrl.u32 %v1213, 7
        %v1215 = vsub.s32 %v1212, %v1214
        %v1216 = vrot.slane %v1202, %v1215
        %v1217 = vcombine.high %v1209, %v1209
        %v1218 = vcombine.high %v1216, %v1216
        %v1220 = vunpack.c.l.s4 1966171168
        %v1221 = vunpack.c.0.s8 %v1220
        %v1222 = vlaneseq
        %v1223 = vshrl.u32 %v1222, 7
        %v1224 = vsub.s32 %v1221, %v1223
        %v1225 = vrot.slane %v1209, %v1224
        %v1227 = vunpack.c.l.s4 1966171168
        %v1228 = vunpack.c.0.s8 %v1227
        %v1229 = vlaneseq
        %v1230 = vshrl.u32 %v1229, 7
        %v1231 = vsub.s32 %v1228, %v1230
        %v1232 = vrot.slane %v1216, %v1231
        %v1234 = vunpack.c.l.s4 1966171168
        %v1235 = vunpack.c.0.s8 %v1234
        %v1236 = vlaneseq
        %v1237 = vshrl.u32 %v1236, 7
        %v1238 = vsub.s32 %v1235, %v1237
        %v1239 = vrot.slane %v1217, %v1238
        %v1241 = vunpack.c.l.s4 1966171168
        %v1242 = vunpack.c.0.s8 %v1241
        %v1243 = vlaneseq
        %v1244 = vshrl.u32 %v1243, 7
        %v1245 = vsub.s32 %v1242, %v1244
        %v1246 = vrot.slane %v1218, %v1245
        %v1247 = vcombine.high %v1225, %v1225
        %v1248 = vcombine.high %v1232, %v1232
        %v1249 = vcombine.high %v1239, %v1239
        %v1250 = vcombine.high %v1246, %v1246
        %v1251 = vadd.f32 %v1198, 1e-05
        %v1252 = vrsqrt.pop %v1251
        %v1254 = vcombine.high %v1252, %v1252
        %v1256 = vunpack.c.l.s4 1966171168
        %v1257 = vunpack.c.0.s8 %v1256
        %v1258 = vlaneseq
        %v1259 = vshrl.u32 %v1258, 7
        %v1260 = vsub.s32 %v1257, %v1259
        %v1261 = vrot.slane %v1252, %v1260
        %v1263 = vunpack.c.l.s4 1966171168
        %v1264 = vunpack.c.0.s8 %v1263
        %v1265 = vlaneseq
        %v1266 = vshrl.u32 %v1265, 7
        %v1267 = vsub.s32 %v1264, %v1266
        %v1268 = vrot.slane %v1254, %v1267
        %v1269 = vcombine.high %v1261, %v1261
        %v1270 = vcombine.high %v1268, %v1268
        %v1272 = vunpack.c.l.s4 1966171168
        %v1273 = vunpack.c.0.s8 %v1272
        %v1274 = vlaneseq
        %v1275 = vshrl.u32 %v1274, 7
        %v1276 = vsub.s32 %v1273, %v1275
        %v1277 = vrot.slane %v1261, %v1276
        %v1279 = vunpack.c.l.s4 1966171168
        %v1280 = vunpack.c.0.s8 %v1279
        %v1281 = vlaneseq
        %v1282 = vshrl.u32 %v1281, 7
        %v1283 = vsub.s32 %v1280, %v1282
        %v1284 = vrot.slane %v1268, %v1283
        %v1286 = vunpack.c.l.s4 1966171168
        %v1287 = vunpack.c.0.s8 %v1286
        %v1288 = vlaneseq
        %v1289 = vshrl.u32 %v1288, 7
        %v1290 = vsub.s32 %v1287, %v1289
        %v1291 = vrot.slane %v1269, %v1290
        %v1293 = vunpack.c.l.s4 1966171168
        %v1294 = vunpack.c.0.s8 %v1293
        %v1295 = vlaneseq
        %v1296 = vshrl.u32 %v1295, 7
        %v1297 = vsub.s32 %v1294, %v1296
        %v1298 = vrot.slane %v1270, %v1297
        %v1299 = vcombine.high %v1277, %v1277
        %v1300 = vcombine.high %v1284, %v1284
        %v1301 = vcombine.high %v1291, %v1291
        %v1302 = vcombine.high %v1298, %v1298
        %v1303 = vlaneseq
        %v1304 = vshrl.u32 %v1303, 7
        %v1305 = vsub.s32 0, %v1304
        %v1306 = vrot.slane %v1225, %v1305
        %v1307 = vlaneseq
        %v1308 = vshrl.u32 %v1307, 7
        %v1309 = vsub.s32 0, %v1308
        %v1310 = vrot.slane %v1239, %v1309
        %v1311 = vlaneseq
        %v1312 = vshrl.u32 %v1311, 7
        %v1313 = vsub.s32 0, %v1312
        %v1314 = vrot.slane %v1247, %v1313
        %v1315 = vlaneseq
        %v1316 = vshrl.u32 %v1315, 7
        %v1317 = vsub.s32 0, %v1316
        %v1318 = vrot.slane %v1249, %v1317
        %v1319 = vlaneseq
        %v1320 = vshrl.u32 %v1319, 7
        %v1321 = vsub.s32 0, %v1320
        %v1322 = vrot.slane %v1232, %v1321
        %v1323 = vlaneseq
        %v1324 = vshrl.u32 %v1323, 7
        %v1325 = vsub.s32 0, %v1324
        %v1326 = vrot.slane %v1246, %v1325
        %v1327 = vlaneseq
        %v1328 = vshrl.u32 %v1327, 7
        %v1329 = vsub.s32 0, %v1328
        %v1330 = vrot.slane %v1248, %v1329
        %v1331 = vlaneseq
        %v1332 = vshrl.u32 %v1331, 7
        %v1333 = vsub.s32 0, %v1332
        %v1334 = vrot.slane %v1250, %v1333
        %v1343 = vsub.f32 %v793, %v1306
        %v1344 = vsub.f32 %v796, %v1306
        %v1345 = vsub.f32 %v801, %v1310
        %v1346 = vsub.f32 %v804, %v1310
        %v1347 = vsub.f32 %v809, %v1314
        %v1348 = vsub.f32 %v812, %v1314
        %v1349 = vsub.f32 %v817, %v1318
        %v1350 = vsub.f32 %v820, %v1318
        %v1351 = vsub.f32 %v825, %v1322
        %v1352 = vsub.f32 %v828, %v1322
        %v1353 = vsub.f32 %v833, %v1326
        %v1354 = vsub.f32 %v836, %v1326
        %v1355 = vsub.f32 %v841, %v1330
        %v1356 = vsub.f32 %v844, %v1330
        %v1357 = vsub.f32 %v849, %v1334
        %v1358 = vsub.f32 %v852, %v1334
        %v1359 = vlaneseq
        %v1360 = vshrl.u32 %v1359, 7
        %v1361 = vsub.s32 0, %v1360
        %v1362 = vrot.slane %v1277, %v1361
        %v1363 = vlaneseq
        %v1364 = vshrl.u32 %v1363, 7
        %v1365 = vsub.s32 0, %v1364
        %v1366 = vrot.slane %v1291, %v1365
        %v1367 = vlaneseq
        %v1368 = vshrl.u32 %v1367, 7
        %v1369 = vsub.s32 0, %v1368
        %v1370 = vrot.slane %v1299, %v1369
        %v1371 = vlaneseq
        %v1372 = vshrl.u32 %v1371, 7
        %v1373 = vsub.s32 0, %v1372
        %v1374 = vrot.slane %v1301, %v1373
        %v1375 = vlaneseq
        %v1376 = vshrl.u32 %v1375, 7
        %v1377 = vsub.s32 0, %v1376
        %v1378 = vrot.slane %v1284, %v1377
        %v1379 = vlaneseq
        %v1380 = vshrl.u32 %v1379, 7
        %v1381 = vsub.s32 0, %v1380
        %v1382 = vrot.slane %v1298, %v1381
        %v1383 = vlaneseq
        %v1384 = vshrl.u32 %v1383, 7
        %v1385 = vsub.s32 0, %v1384
        %v1386 = vrot.slane %v1300, %v1385
        %v1387 = vlaneseq
        %v1388 = vshrl.u32 %v1387, 7
        %v1389 = vsub.s32 0, %v1388
        %v1390 = vrot.slane %v1302, %v1389
        %v1399 = vmul.f32 %v1343, %v1362
        %v1400 = vmul.f32 %v1344, %v1362
        %v1401 = vmul.f32 %v1345, %v1366
        %v1402 = vmul.f32 %v1346, %v1366
        %v1403 = vmul.f32 %v1347, %v1370
        %v1404 = vmul.f32 %v1348, %v1370
        %v1405 = vmul.f32 %v1349, %v1374
        %v1406 = vmul.f32 %v1350, %v1374
        %v1407 = vmul.f32 %v1351, %v1378
        %v1408 = vmul.f32 %v1352, %v1378
        %v1409 = vmul.f32 %v1353, %v1382
        %v1410 = vmul.f32 %v1354, %v1382
        %v1411 = vmul.f32 %v1355, %v1386
        %v1412 = vmul.f32 %v1356, %v1386
        %v1413 = vmul.f32 %v1357, %v1390
        %v1414 = vmul.f32 %v1358, %v1390
        %v1415 = vld [vmem:[%s2 + $0x1] sm:$0x1]
        %v1416 = vlaneseq
        %v1417 = vshrl.u32 %v1416, 7
        %v1418 = vsub.s32 0, %v1417
        %v1419 = vrot.slane %v1415, %v1418
        %v1420 = vmul.f32 %v1399, %v1419
        %v1421 = vmul.f32 %v1400, %v1419
        %v1422 = vmul.f32 %v1401, %v1419
        %v1423 = vmul.f32 %v1402, %v1419
        %v1424 = vmul.f32 %v1403, %v1419
        %v1425 = vmul.f32 %v1404, %v1419
        %v1426 = vmul.f32 %v1405, %v1419
        %v1427 = vmul.f32 %v1406, %v1419
        %v1428 = vmul.f32 %v1407, %v1419
        %v1429 = vmul.f32 %v1408, %v1419
        %v1430 = vmul.f32 %v1409, %v1419
        %v1431 = vmul.f32 %v1410, %v1419
        %v1432 = vmul.f32 %v1411, %v1419
        %v1433 = vmul.f32 %v1412, %v1419
        %v1434 = vmul.f32 %v1413, %v1419
        %v1435 = vmul.f32 %v1414, %v1419
        %v1436 = vld [vmem:[%s2 + $0x2] sm:$0x1]
        %v1437 = vlaneseq
        %v1438 = vshrl.u32 %v1437, 7
        %v1439 = vsub.s32 0, %v1438
        %v1440 = vrot.slane %v1436, %v1439
        %v1441 = vadd.f32 %v1420, %v1440
        %v1442 = vadd.f32 %v1421, %v1440
        %v1443 = vadd.f32 %v1422, %v1440
        %v1444 = vadd.f32 %v1423, %v1440
        %v1445 = vadd.f32 %v1424, %v1440
        %v1446 = vadd.f32 %v1425, %v1440
        %v1447 = vadd.f32 %v1426, %v1440
        %v1448 = vadd.f32 %v1427, %v1440
        %v1449 = vadd.f32 %v1428, %v1440
        %v1450 = vadd.f32 %v1429, %v1440
        %v1451 = vadd.f32 %v1430, %v1440
        %v1452 = vadd.f32 %v1431, %v1440
        %v1453 = vadd.f32 %v1432, %v1440
        %v1454 = vadd.f32 %v1433, %v1440
        %v1455 = vadd.f32 %v1434, %v1440
        %v1456 = vadd.f32 %v1435, %v1440
        %v1457 = vxor.u32 %v1441, 2147483648
        %v1458 = vxor.u32 %v1442, 2147483648
        %v1459 = vxor.u32 %v1443, 2147483648
        %v1460 = vxor.u32 %v1444, 2147483648
        %v1461 = vxor.u32 %v1445, 2147483648
        %v1462 = vxor.u32 %v1446, 2147483648
        %v1463 = vxor.u32 %v1447, 2147483648
        %v1464 = vxor.u32 %v1448, 2147483648
        %v1465 = vxor.u32 %v1449, 2147483648
        %v1466 = vxor.u32 %v1450, 2147483648
        %v1467 = vxor.u32 %v1451, 2147483648
        %v1468 = vxor.u32 %v1452, 2147483648
        %v1469 = vxor.u32 %v1453, 2147483648
        %v1470 = vxor.u32 %v1454, 2147483648
        %v1471 = vxor.u32 %v1455, 2147483648
        %v1472 = vxor.u32 %v1456, 2147483648
        %v1473 = vmul.f32 %v1457, 1.442695
        %v1474 = vpow.pop %v1473
        %v1475 = vmul.f32 %v1458, 1.442695
        %v1476 = vpow.pop %v1475
        %v1477 = vmul.f32 %v1459, 1.442695
        %v1478 = vpow.pop %v1477
        %v1479 = vmul.f32 %v1460, 1.442695
        %v1480 = vpow.pop %v1479
        %v1481 = vmul.f32 %v1461, 1.442695
        %v1482 = vpow.pop %v1481
        %v1483 = vmul.f32 %v1462, 1.442695
        %v1484 = vpow.pop %v1483
        %v1485 = vmul.f32 %v1463, 1.442695
        %v1486 = vpow.pop %v1485
        %v1487 = vmul.f32 %v1464, 1.442695
        %v1488 = vpow.pop %v1487
        %v1489 = vmul.f32 %v1465, 1.442695
        %v1490 = vpow.pop %v1489
        %v1491 = vmul.f32 %v1466, 1.442695
        %v1492 = vpow.pop %v1491
        %v1493 = vmul.f32 %v1467, 1.442695
        %v1494 = vpow.pop %v1493
        %v1495 = vmul.f32 %v1468, 1.442695
        %v1496 = vpow.pop %v1495
        %v1497 = vmul.f32 %v1469, 1.442695
        %v1498 = vpow.pop %v1497
        %v1499 = vmul.f32 %v1470, 1.442695
        %v1500 = vpow.pop %v1499
        %v1501 = vmul.f32 %v1471, 1.442695
        %v1502 = vpow.pop %v1501
        %v1503 = vmul.f32 %v1472, 1.442695
        %v1504 = vpow.pop %v1503
        %v1505 = vadd.f32 %v1474, 1.0
        %v1506 = vadd.f32 %v1476, 1.0
        %v1507 = vadd.f32 %v1478, 1.0
        %v1508 = vadd.f32 %v1480, 1.0
        %v1509 = vadd.f32 %v1482, 1.0
        %v1510 = vadd.f32 %v1484, 1.0
        %v1511 = vadd.f32 %v1486, 1.0
        %v1512 = vadd.f32 %v1488, 1.0
        %v1513 = vadd.f32 %v1490, 1.0
        %v1514 = vadd.f32 %v1492, 1.0
        %v1515 = vadd.f32 %v1494, 1.0
        %v1516 = vadd.f32 %v1496, 1.0
        %v1517 = vadd.f32 %v1498, 1.0
        %v1518 = vadd.f32 %v1500, 1.0
        %v1519 = vadd.f32 %v1502, 1.0
        %v1520 = vadd.f32 %v1504, 1.0
        %v1521 = vrcp.pop %v1505
        %v1522 = vmul.f32 1.0, %v1521
        %v1523 = vrcp.pop %v1506
        %v1524 = vmul.f32 1.0, %v1523
        %v1525 = vrcp.pop %v1507
        %v1526 = vmul.f32 1.0, %v1525
        %v1527 = vrcp.pop %v1508
        %v1528 = vmul.f32 1.0, %v1527
        %v1529 = vrcp.pop %v1509
        %v1530 = vmul.f32 1.0, %v1529
        %v1531 = vrcp.pop %v1510
        %v1532 = vmul.f32 1.0, %v1531
        %v1533 = vrcp.pop %v1511
        %v1534 = vmul.f32 1.0, %v1533
        %v1535 = vrcp.pop %v1512
        %v1536 = vmul.f32 1.0, %v1535
        %v1537 = vrcp.pop %v1513
        %v1538 = vmul.f32 1.0, %v1537
        %v1539 = vrcp.pop %v1514
        %v1540 = vmul.f32 1.0, %v1539
        %v1541 = vrcp.pop %v1515
        %v1542 = vmul.f32 1.0, %v1541
        %v1543 = vrcp.pop %v1516
        %v1544 = vmul.f32 1.0, %v1543
        %v1545 = vrcp.pop %v1517
        %v1546 = vmul.f32 1.0, %v1545
        %v1547 = vrcp.pop %v1518
        %v1548 = vmul.f32 1.0, %v1547
        %v1549 = vrcp.pop %v1519
        %v1550 = vmul.f32 1.0, %v1549
        %v1551 = vrcp.pop %v1520
        %v1552 = vmul.f32 1.0, %v1551
        %v1553 = vmul.f32 %v1441, %v1522
        %v1554 = vmul.f32 %v1442, %v1524
        %v1555 = vmul.f32 %v1443, %v1526
        %v1556 = vmul.f32 %v1444, %v1528
        %v1557 = vmul.f32 %v1445, %v1530
        %v1558 = vmul.f32 %v1446, %v1532
        %v1559 = vmul.f32 %v1447, %v1534
        %v1560 = vmul.f32 %v1448, %v1536
        %v1561 = vmul.f32 %v1449, %v1538
        %v1562 = vmul.f32 %v1450, %v1540
        %v1563 = vmul.f32 %v1451, %v1542
        %v1564 = vmul.f32 %v1452, %v1544
        %v1565 = vmul.f32 %v1453, %v1546
        %v1566 = vmul.f32 %v1454, %v1548
        %v1567 = vmul.f32 %v1455, %v1550
        %v1568 = vmul.f32 %v1456, %v1552
        %v1585 = vrot.slane %v1553, 7
        %v1586 = vrot.slane %v1554, 7
        %v1587 = vsel %vm414, %v1585, %v1586
        %v1588 = vrot.slane %v1555, 7
        %v1589 = vrot.slane %v1556, 7
        %v1590 = vsel %vm414, %v1588, %v1589
        %v1591 = vrot.slane %v1557, 7
        %v1592 = vrot.slane %v1558, 7
        %v1593 = vsel %vm414, %v1591, %v1592
        %v1594 = vrot.slane %v1559, 7
        %v1595 = vrot.slane %v1560, 7
        %v1596 = vsel %vm414, %v1594, %v1595
        %v1597 = vrot.slane %v1561, 7
        %v1598 = vrot.slane %v1562, 7
        %v1599 = vsel %vm414, %v1597, %v1598
        %v1600 = vrot.slane %v1563, 7
        %v1601 = vrot.slane %v1564, 7
        %v1602 = vsel %vm414, %v1600, %v1601
        %v1603 = vrot.slane %v1565, 7
        %v1604 = vrot.slane %v1566, 7
        %v1605 = vsel %vm414, %v1603, %v1604
        %v1606 = vrot.slane %v1567, 7
        %v1607 = vrot.slane %v1568, 7
        %v1608 = vsel %vm414, %v1606, %v1607
        %v1633 = vsel %vm414, 0.0, %v1585
        %v1634 = vsel %vm414, 0.0, %v1588
        %v1635 = vsel %vm414, 0.0, %v1591
        %v1636 = vsel %vm414, 0.0, %v1594
        %v1637 = vsel %vm414, 0.0, %v1597
        %v1638 = vsel %vm414, 0.0, %v1600
        %v1639 = vsel %vm414, 0.0, %v1603
        %v1640 = vsel %vm414, 0.0, %v1606
        %v1641 = vsel %vm414, %v1586, 0.0
        %v1642 = vsel %vm414, %v1589, 0.0
        %v1643 = vsel %vm414, %v1592, 0.0
        %v1644 = vsel %vm414, %v1595, 0.0
        %v1645 = vsel %vm414, %v1598, 0.0
        %v1646 = vsel %vm414, %v1601, 0.0
        %v1647 = vsel %vm414, %v1604, 0.0
        %v1648 = vsel %vm414, %v1607, 0.0
        %v1665 = vrot.slane %v1633, 2
        %v1666 = vrot.slane %v1587, 2
        %v1667 = vsel %vm543, %v1665, %v1666
        %v1668 = vrot.slane %v1641, 2
        %v1669 = vsel %vm543, %v1666, %v1668
        %v1670 = vrot.slane %v1634, 2
        %v1671 = vrot.slane %v1590, 2
        %v1672 = vsel %vm543, %v1670, %v1671
        %v1673 = vrot.slane %v1642, 2
        %v1674 = vsel %vm543, %v1671, %v1673
        %v1675 = vrot.slane %v1635, 2
        %v1676 = vrot.slane %v1593, 2
        %v1677 = vsel %vm543, %v1675, %v1676
        %v1678 = vrot.slane %v1643, 2
        %v1679 = vsel %vm543, %v1676, %v1678
        %v1680 = vrot.slane %v1636, 2
        %v1681 = vrot.slane %v1596, 2
        %v1682 = vsel %vm543, %v1680, %v1681
        %v1683 = vrot.slane %v1644, 2
        %v1684 = vsel %vm543, %v1681, %v1683
        %v1685 = vrot.slane %v1637, 2
        %v1686 = vrot.slane %v1599, 2
        %v1687 = vsel %vm543, %v1685, %v1686
        %v1688 = vrot.slane %v1645, 2
        %v1689 = vsel %vm543, %v1686, %v1688
        %v1690 = vrot.slane %v1638, 2
        %v1691 = vrot.slane %v1602, 2
        %v1692 = vsel %vm543, %v1690, %v1691
        %v1693 = vrot.slane %v1646, 2
        %v1694 = vsel %vm543, %v1691, %v1693
        %v1695 = vrot.slane %v1639, 2
        %v1696 = vrot.slane %v1605, 2
        %v1697 = vsel %vm543, %v1695, %v1696
        %v1698 = vrot.slane %v1647, 2
        %v1699 = vsel %vm543, %v1696, %v1698
        %v1700 = vrot.slane %v1640, 2
        %v1701 = vrot.slane %v1608, 2
        %v1702 = vsel %vm543, %v1700, %v1701
        %v1703 = vrot.slane %v1648, 2
        %v1704 = vsel %vm543, %v1701, %v1703
        %v1721 = vpack.c.bf16 %v1587, %v1633
        %v1722 = vpack.c.bf16 %v1554, %v1553
        %v1723 = vpack.c.bf16 %v1669, %v1667
        %v1724 = vpack.c.bf16 %v1590, %v1634
        %v1725 = vpack.c.bf16 %v1556, %v1555
        %v1726 = vpack.c.bf16 %v1674, %v1672
        %v1727 = vpack.c.bf16 %v1593, %v1635
        %v1728 = vpack.c.bf16 %v1558, %v1557
        %v1729 = vpack.c.bf16 %v1679, %v1677
        %v1730 = vpack.c.bf16 %v1596, %v1636
        %v1731 = vpack.c.bf16 %v1560, %v1559
        %v1732 = vpack.c.bf16 %v1684, %v1682
        %v1733 = vpack.c.bf16 %v1599, %v1637
        %v1734 = vpack.c.bf16 %v1562, %v1561
        %v1735 = vpack.c.bf16 %v1689, %v1687
        %v1736 = vpack.c.bf16 %v1602, %v1638
        %v1737 = vpack.c.bf16 %v1564, %v1563
        %v1738 = vpack.c.bf16 %v1694, %v1692
        %v1739 = vpack.c.bf16 %v1605, %v1639
        %v1740 = vpack.c.bf16 %v1566, %v1565
        %v1741 = vpack.c.bf16 %v1699, %v1697
        %v1742 = vpack.c.bf16 %v1608, %v1640
        %v1743 = vpack.c.bf16 %v1568, %v1567
        %v1744 = vpack.c.bf16 %v1704, %v1702
        %v1745 = vld [vmem:[#allocation5] sm:$0xf]
        %v1746 = vld [vmem:[#allocation5 + $0x4] sm:$0xf]
        %v1747 = vld [vmem:[#allocation5 + $0x8] sm:$0xf]
        %v1748 = vld [vmem:[#allocation5 + $0xc] sm:$0xf]
        %v1749 = vld [vmem:[#allocation5 + $0x10] sm:$0xf]
        %v1750 = vld [vmem:[#allocation5 + $0x14] sm:$0xf]
        %v1751 = vld [vmem:[#allocation5 + $0x18] sm:$0xf]
        %v1752 = vld [vmem:[#allocation5 + $0x1c] sm:$0xf]
        %v1753 = vld [vmem:[#allocation5 + $0x20] sm:$0xf]
        %v1754 = vld [vmem:[#allocation5 + $0x24] sm:$0xf]
        %v1755 = vld [vmem:[#allocation5 + $0x28] sm:$0xf]
        %v1756 = vld [vmem:[#allocation5 + $0x2c] sm:$0xf]
        %v1757 = vld [vmem:[#allocation5 + $0x30] sm:$0xf]
        %v1758 = vld [vmem:[#allocation5 + $0x34] sm:$0xf]
        %v1759 = vld [vmem:[#allocation5 + $0x38] sm:$0xf]
        %v1760 = vld [vmem:[#allocation5 + $0x3c] sm:$0xf]
        %v1761 = vld [vmem:[#allocation5 + $0x40] sm:$0xf]
        %v1762 = vld [vmem:[#allocation5 + $0x44] sm:$0xf]
        %v1763 = vld [vmem:[#allocation5 + $0x48] sm:$0xf]
        %v1764 = vld [vmem:[#allocation5 + $0x4c] sm:$0xf]
        %v1765 = vld [vmem:[#allocation5 + $0x50] sm:$0xf]
        %v1766 = vld [vmem:[#allocation5 + $0x54] sm:$0xf]
        %v1767 = vld [vmem:[#allocation5 + $0x58] sm:$0xf]
        %v1768 = vld [vmem:[#allocation5 + $0x5c] sm:$0xf]
        %v1769 = vld [vmem:[#allocation5 + $0x60] sm:$0xf]
        %v1770 = vld [vmem:[#allocation5 + $0x64] sm:$0xf]
        %v1771 = vld [vmem:[#allocation5 + $0x68] sm:$0xf]
        %v1772 = vld [vmem:[#allocation5 + $0x6c] sm:$0xf]
        %v1773 = vld [vmem:[#allocation5 + $0x70] sm:$0xf]
        %v1774 = vld [vmem:[#allocation5 + $0x74] sm:$0xf]
        %v1775 = vld [vmem:[#allocation5 + $0x78] sm:$0xf]
        %v1776 = vld [vmem:[#allocation5 + $0x7c] sm:$0xf]
        %v1777 = vld [vmem:[#allocation5 + $0x80] sm:$0xf]
        %v1778 = vld [vmem:[#allocation5 + $0x84] sm:$0xf]
        %v1779 = vld [vmem:[#allocation5 + $0x88] sm:$0xf]
        %v1780 = vld [vmem:[#allocation5 + $0x8c] sm:$0xf]
        %v1781 = vld [vmem:[#allocation5 + $0x90] sm:$0xf]
        %v1782 = vld [vmem:[#allocation5 + $0x94] sm:$0xf]
        %v1783 = vld [vmem:[#allocation5 + $0x98] sm:$0xf]
        %v1784 = vld [vmem:[#allocation5 + $0x9c] sm:$0xf]
        %v1785 = vld [vmem:[#allocation5 + $0xa0] sm:$0xf]
        %v1786 = vld [vmem:[#allocation5 + $0xa4] sm:$0xf]
        %v1787 = vld [vmem:[#allocation5 + $0xa8] sm:$0xf]
        %v1788 = vld [vmem:[#allocation5 + $0xac] sm:$0xf]
        %v1789 = vld [vmem:[#allocation5 + $0xb0] sm:$0xf]
        %v1790 = vld [vmem:[#allocation5 + $0xb4] sm:$0xf]
        %v1791 = vld [vmem:[#allocation5 + $0xb8] sm:$0xf]
        %v1792 = vld [vmem:[#allocation5 + $0xbc] sm:$0xf]
        %v1793 = vld [vmem:[#allocation7] sm:$0x1]
        %v1794 = vlaneseq
        %v1795 = vshrl.u32 %v1794, 7
        %v1796 = vsub.s32 0, %v1795
        %v1797 = vrot.slane %v1793, %v1796
        %v1846 = vunpack.c.l.b16 %v1745
        %v1847 = vunpack.c.l.b16 %v1746
        %v1848 = vunpack.c.l.b16 %v1747
        %v1849 = vunpack.c.l.b16 %v1748
        %v1850 = vunpack.c.l.b16 %v1749
        %v1851 = vunpack.c.l.b16 %v1750
        %v1852 = vunpack.c.l.b16 %v1751
        %v1853 = vunpack.c.l.b16 %v1752
        %v1854 = vunpack.c.l.b16 %v1753
        %v1855 = vunpack.c.l.b16 %v1754
        %v1856 = vunpack.c.l.b16 %v1755
        %v1857 = vunpack.c.l.b16 %v1756
        %v1858 = vunpack.c.l.b16 %v1757
        %v1859 = vunpack.c.l.b16 %v1758
        %v1860 = vunpack.c.l.b16 %v1759
        %v1861 = vunpack.c.l.b16 %v1760
        %v1862 = vunpack.c.l.b16 %v1761
        %v1863 = vunpack.c.l.b16 %v1762
        %v1864 = vunpack.c.l.b16 %v1763
        %v1865 = vunpack.c.l.b16 %v1764
        %v1866 = vunpack.c.l.b16 %v1765
        %v1867 = vunpack.c.l.b16 %v1766
        %v1868 = vunpack.c.l.b16 %v1767
        %v1869 = vunpack.c.l.b16 %v1768
        %v1870 = vunpack.c.l.b16 %v1769
        %v1871 = vunpack.c.l.b16 %v1770
        %v1872 = vunpack.c.l.b16 %v1771
        %v1873 = vunpack.c.l.b16 %v1772
        %v1874 = vunpack.c.l.b16 %v1773
        %v1875 = vunpack.c.l.b16 %v1774
        %v1876 = vunpack.c.l.b16 %v1775
        %v1877 = vunpack.c.l.b16 %v1776
        %v1878 = vunpack.c.l.b16 %v1777
        %v1879 = vunpack.c.l.b16 %v1778
        %v1880 = vunpack.c.l.b16 %v1779
        %v1881 = vunpack.c.l.b16 %v1780
        %v1882 = vunpack.c.l.b16 %v1781
        %v1883 = vunpack.c.l.b16 %v1782
        %v1884 = vunpack.c.l.b16 %v1783
        %v1885 = vunpack.c.l.b16 %v1784
        %v1886 = vunpack.c.l.b16 %v1785
        %v1887 = vunpack.c.l.b16 %v1786
        %v1888 = vunpack.c.l.b16 %v1787
        %v1889 = vunpack.c.l.b16 %v1788
        %v1890 = vunpack.c.l.b16 %v1789
        %v1891 = vunpack.c.l.b16 %v1790
        %v1892 = vunpack.c.l.b16 %v1791
        %v1893 = vunpack.c.l.b16 %v1792
        %v1894 = vpack.c.b16 %v1847, %v1846
        %v1895 = vpack.c.b16 %v1849, %v1848
        %v1896 = vpack.c.b16 %v1851, %v1850
        %v1897 = vpack.c.b16 %v1853, %v1852
        %v1898 = vpack.c.b16 %v1855, %v1854
        %v1899 = vpack.c.b16 %v1857, %v1856
        %v1900 = vpack.c.b16 %v1859, %v1858
        %v1901 = vpack.c.b16 %v1861, %v1860
        %v1902 = vpack.c.b16 %v1863, %v1862
        %v1903 = vpack.c.b16 %v1865, %v1864
        %v1904 = vpack.c.b16 %v1867, %v1866
        %v1905 = vpack.c.b16 %v1869, %v1868
        %v1906 = vpack.c.b16 %v1871, %v1870
        %v1907 = vpack.c.b16 %v1873, %v1872
        %v1908 = vpack.c.b16 %v1875, %v1874
        %v1909 = vpack.c.b16 %v1877, %v1876
        %v1910 = vpack.c.b16 %v1879, %v1878
        %v1911 = vpack.c.b16 %v1881, %v1880
        %v1912 = vpack.c.b16 %v1883, %v1882
        %v1913 = vpack.c.b16 %v1885, %v1884
        %v1914 = vpack.c.b16 %v1887, %v1886
        %v1915 = vpack.c.b16 %v1889, %v1888
        %v1916 = vpack.c.b16 %v1891, %v1890
        %v1917 = vpack.c.b16 %v1893, %v1892
        %1942 = vmatprep.subr.bf16.mxu0 0
        %1943 = vmatpush1.bf16.msra.mxu0 %v1894
        %1944 = vmatprep.subr.bf16.mxu0 0
        %1945 = vmatpush1.bf16.msra.mxu0 %v1895
        %1946 = vmatprep.subr.bf16.mxu0 0
        %1947 = vmatpush1.bf16.msra.mxu0 %v1896
        %1948 = vmatprep.subr.bf16.mxu0 0
        %1949 = vmatpush1.bf16.msra.mxu0 %v1897
        %1950 = vmatprep.subr.bf16.mxu0 0
        %1951 = vmatpush1.bf16.msra.mxu0 %v1898
        %1952 = vmatprep.subr.bf16.mxu0 0
        %1953 = vmatpush1.bf16.msra.mxu0 %v1899
        %1954 = vmatprep.subr.bf16.mxu0 0
        %1955 = vmatpush1.bf16.msra.mxu0 %v1900
        %1956 = vmatprep.subr.bf16.mxu0 0
        %1957 = vmatpush1.bf16.msra.mxu0 %v1901
        %1958 = vmatprep.subr.bf16.mxu0 0
        %1959 = vmatpush1.bf16.msra.mxu0 %v1902
        %1960 = vmatprep.subr.bf16.mxu0 0
        %1961 = vmatpush1.bf16.msra.mxu0 %v1903
        %1962 = vmatprep.subr.bf16.mxu0 0
        %1963 = vmatpush1.bf16.msra.mxu0 %v1904
        %1964 = vmatprep.subr.bf16.mxu0 0
        %1965 = vmatpush1.bf16.msra.mxu0 %v1905
        %1966 = vmatprep.subr.bf16.mxu0 0
        %1967 = vmatpush1.bf16.msra.mxu0 %v1906
        %1968 = vmatprep.subr.bf16.mxu0 0
        %1969 = vmatpush1.bf16.msra.mxu0 %v1907
        %1970 = vmatprep.subr.bf16.mxu0 0
        %1971 = vmatpush1.bf16.msra.mxu0 %v1908
        %1972 = vmatprep.subr.bf16.mxu0 0
        %1973 = vmatpush1.bf16.msra.mxu0 %v1909
        %1974 = vmatprep.mubr.bf16.mxu0 %v1722
        %1975 = vmatmul.mubr.bf16.gmra.mrb[0].mxu0 %v1721
        %v1976 = vpop.f32.mrb[0].mxu0
        %v1977 = vadd.f32 %v1797, %v1976
        %v1978 = vpop.f32.mrb[0].mxu0
        %v1979 = vpop.f32.mrb[0].mxu0
        %v1980 = vadd.f32 %v1797, %v1979
        %v1981 = vpop.f32.mrb[0].mxu0
        %1982 = vmatprep.mubr.bf16.mxu0 %v1725
        %1983 = vmatmul.mubr.bf16.gmra.mrb[0].mxu0 %v1724
        %v1984 = vpop.f32.mrb[0].mxu0
        %v1985 = vadd.f32 %v1797, %v1984
        %v1986 = vpop.f32.mrb[0].mxu0
        %v1987 = vpop.f32.mrb[0].mxu0
        %v1988 = vadd.f32 %v1797, %v1987
        %v1989 = vpop.f32.mrb[0].mxu0
        %1990 = vmatprep.mubr.bf16.mxu0 %v1728
        %1991 = vmatmul.mubr.bf16.gmra.mrb[0].mxu0 %v1727
        %v1992 = vpop.f32.mrb[0].mxu0
        %v1993 = vadd.f32 %v1797, %v1992
        %v1994 = vpop.f32.mrb[0].mxu0
        %v1995 = vpop.f32.mrb[0].mxu0
        %v1996 = vadd.f32 %v1797, %v1995
        %v1997 = vpop.f32.mrb[0].mxu0
        %1998 = vmatprep.mubr.bf16.mxu0 %v1731
        %1999 = vmatmul.mubr.bf16.gmra.mrb[0].mxu0 %v1730
        %v2000 = vpop.f32.mrb[0].mxu0
        %v2001 = vadd.f32 %v1797, %v2000
        %v2002 = vpop.f32.mrb[0].mxu0
        %v2003 = vpop.f32.mrb[0].mxu0
        %v2004 = vadd.f32 %v1797, %v2003
        %v2005 = vpop.f32.mrb[0].mxu0
        %2006 = vmatprep.mubr.bf16.mxu0 %v1734
        %2007 = vmatmul.mubr.bf16.gmra.mrb[0].mxu0 %v1733
        %v2008 = vpop.f32.mrb[0].mxu0
        %v2009 = vadd.f32 %v1797, %v2008
        %v2010 = vpop.f32.mrb[0].mxu0
        %v2011 = vpop.f32.mrb[0].mxu0
        %v2012 = vadd.f32 %v1797, %v2011
        %v2013 = vpop.f32.mrb[0].mxu0
        %2014 = vmatprep.mubr.bf16.mxu0 %v1737
        %2015 = vmatmul.mubr.bf16.gmra.mrb[0].mxu0 %v1736
        %v2016 = vpop.f32.mrb[0].mxu0
        %v2017 = vadd.f32 %v1797, %v2016
        %v2018 = vpop.f32.mrb[0].mxu0
        %v2019 = vpop.f32.mrb[0].mxu0
        %v2020 = vadd.f32 %v1797, %v2019
        %v2021 = vpop.f32.mrb[0].mxu0
        %2022 = vmatprep.mubr.bf16.mxu0 %v1740
        %2023 = vmatmul.mubr.bf16.gmra.mrb[0].mxu0 %v1739
        %v2024 = vpop.f32.mrb[0].mxu0
        %v2025 = vadd.f32 %v1797, %v2024
        %v2026 = vpop.f32.mrb[0].mxu0
        %v2027 = vpop.f32.mrb[0].mxu0
        %v2028 = vadd.f32 %v1797, %v2027
        %v2029 = vpop.f32.mrb[0].mxu0
        %2030 = vmatprep.mubr.bf16.mxu0 %v1743
        %2031 = vmatmul.mubr.bf16.gmra.mrb[0].mxu0 %v1742
        %v2032 = vpop.f32.mrb[0].mxu0
        %v2033 = vadd.f32 %v1797, %v2032
        %v2034 = vpop.f32.mrb[0].mxu0
        %v2035 = vpop.f32.mrb[0].mxu0
        %v2036 = vadd.f32 %v1797, %v2035
        %v2037 = vpop.f32.mrb[0].mxu0
        %2038 = vdwg.mxu0
        %2039 = vmatprep.subr.bf16.mxu0 0
        %2040 = vmatpush1.bf16.msra.mxu0 %v1910
        %2041 = vmatprep.subr.bf16.mxu0 0
        %2042 = vmatpush1.bf16.msra.mxu0 %v1911
        %2043 = vmatprep.subr.bf16.mxu0 0
        %2044 = vmatpush1.bf16.msra.mxu0 %v1912
        %2045 = vmatprep.subr.bf16.mxu0 0
        %2046 = vmatpush1.bf16.msra.mxu0 %v1913
        %2047 = vmatprep.subr.bf16.mxu0 0
        %2048 = vmatpush1.bf16.msra.mxu0 %v1914
        %2049 = vmatprep.subr.bf16.mxu0 0
        %2050 = vmatpush1.bf16.msra.mxu0 %v1915
        %2051 = vmatprep.subr.bf16.mxu0 0
        %2052 = vmatpush1.bf16.msra.mxu0 %v1916
        %2053 = vmatprep.subr.bf16.mxu0 0
        %2054 = vmatpush1.bf16.msra.mxu0 %v1917
        %2055 = vmatprep.subr.bf16.mxu0 0
        %2056 = vmatpush1.bf16.msra.mxu0 0
        %2057 = vmatprep.subr.bf16.mxu0 0
        %2058 = vmatpush1.bf16.msra.mxu0 0
        %2059 = vmatprep.subr.bf16.mxu0 0
        %2060 = vmatpush1.bf16.msra.mxu0 0
        %2061 = vmatprep.subr.bf16.mxu0 0
        %2062 = vmatpush1.bf16.msra.mxu0 0
        %2063 = vmatprep.subr.bf16.mxu0 0
        %2064 = vmatpush1.bf16.msra.mxu0 0
        %2065 = vmatprep.subr.bf16.mxu0 0
        %2066 = vmatpush1.bf16.msra.mxu0 0
        %2067 = vmatprep.subr.bf16.mxu0 0
        %2068 = vmatpush1.bf16.msra.mxu0 0
        %2069 = vmatprep.subr.bf16.mxu0 0
        %2070 = vmatpush1.bf16.msra.mxu0 0
        %2071 = vmatprep.mubr.bf16.mxu0 0
        %2072 = vmatmul.mubr.bf16.gmra.mrb[0].mxu0 %v1723
        %v2073 = vpop.f32.mrb[0].mxu0
        %v2074 = vadd.f32 %v1977, %v2073
        %v2075 = vpop.f32.mrb[0].mxu0
        %v2076 = vpop.f32.mrb[0].mxu0
        %v2077 = vadd.f32 %v1980, %v2076
        %v2078 = vpop.f32.mrb[0].mxu0
        %2079 = vmatprep.mubr.bf16.mxu0 0
        %2080 = vmatmul.mubr.bf16.gmra.mrb[0].mxu0 %v1726
        %v2081 = vpop.f32.mrb[0].mxu0
        %v2082 = vadd.f32 %v1985, %v2081
        %v2083 = vpop.f32.mrb[0].mxu0
        %v2084 = vpop.f32.mrb[0].mxu0
        %v2085 = vadd.f32 %v1988, %v2084
        %v2086 = vpop.f32.mrb[0].mxu0
        %2087 = vmatprep.mubr.bf16.mxu0 0
        %2088 = vmatmul.mubr.bf16.gmra.mrb[0].mxu0 %v1729
        %v2089 = vpop.f32.mrb[0].mxu0
        %v2090 = vadd.f32 %v1993, %v2089
        %v2091 = vpop.f32.mrb[0].mxu0
        %v2092 = vpop.f32.mrb[0].mxu0
        %v2093 = vadd.f32 %v1996, %v2092
        %v2094 = vpop.f32.mrb[0].mxu0
        %2095 = vmatprep.mubr.bf16.mxu0 0
        %2096 = vmatmul.mubr.bf16.gmra.mrb[0].mxu0 %v1732
        %v2097 = vpop.f32.mrb[0].mxu0
        %v2098 = vadd.f32 %v2001, %v2097
        %v2099 = vpop.f32.mrb[0].mxu0
        %v2100 = vpop.f32.mrb[0].mxu0
        %v2101 = vadd.f32 %v2004, %v2100
        %v2102 = vpop.f32.mrb[0].mxu0
        %2103 = vmatprep.mubr.bf16.mxu0 0
        %2104 = vmatmul.mubr.bf16.gmra.mrb[0].mxu0 %v1735
        %v2105 = vpop.f32.mrb[0].mxu0
        %v2106 = vadd.f32 %v2009, %v2105
        %v2107 = vpop.f32.mrb[0].mxu0
        %v2108 = vpop.f32.mrb[0].mxu0
        %v2109 = vadd.f32 %v2012, %v2108
        %v2110 = vpop.f32.mrb[0].mxu0
        %2111 = vmatprep.mubr.bf16.mxu0 0
        %2112 = vmatmul.mubr.bf16.gmra.mrb[0].mxu0 %v1738
        %v2113 = vpop.f32.mrb[0].mxu0
        %v2114 = vadd.f32 %v2017, %v2113
        %v2115 = vpop.f32.mrb[0].mxu0
        %v2116 = vpop.f32.mrb[0].mxu0
        %v2117 = vadd.f32 %v2020, %v2116
        %v2118 = vpop.f32.mrb[0].mxu0
        %2119 = vmatprep.mubr.bf16.mxu0 0
        %2120 = vmatmul.mubr.bf16.gmra.mrb[0].mxu0 %v1741
        %v2121 = vpop.f32.mrb[0].mxu0
        %v2122 = vadd.f32 %v2025, %v2121
        %v2123 = vpop.f32.mrb[0].mxu0
        %v2124 = vpop.f32.mrb[0].mxu0
        %v2125 = vadd.f32 %v2028, %v2124
        %v2126 = vpop.f32.mrb[0].mxu0
        %2127 = vmatprep.mubr.bf16.mxu0 0
        %2128 = vmatmul.mubr.bf16.gmra.mrb[0].mxu0 %v1744
        %v2129 = vpop.f32.mrb[0].mxu0
        %v2130 = vadd.f32 %v2033, %v2129
        %v2131 = vpop.f32.mrb[0].mxu0
        %v2132 = vpop.f32.mrb[0].mxu0
        %v2133 = vadd.f32 %v2036, %v2132
        %v2134 = vpop.f32.mrb[0].mxu0
        %2135 = vdwg.mxu0
        %v2136 = vadd.f32 %v2074, %v2077
        %v2137 = vrot.slane %v2136, 4
        %v2138 = vadd.f32 %v2136, %v2137
        %v2139 = vrot.slane %v2138, 2
        %v2140 = vadd.f32 %v2138, %v2139
        %v2141 = vrot.slane %v2140, 1
        %v2142 = vadd.f32 %v2140, %v2141
        %v2143 = vadd.f32 %v2082, %v2085
        %v2144 = vrot.slane %v2143, 4
        %v2145 = vadd.f32 %v2143, %v2144
        %v2146 = vrot.slane %v2145, 2
        %v2147 = vadd.f32 %v2145, %v2146
        %v2148 = vrot.slane %v2147, 1
        %v2149 = vadd.f32 %v2147, %v2148
        %v2150 = vadd.f32 %v2090, %v2093
        %v2151 = vrot.slane %v2150, 4
        %v2152 = vadd.f32 %v2150, %v2151
        %v2153 = vrot.slane %v2152, 2
        %v2154 = vadd.f32 %v2152, %v2153
        %v2155 = vrot.slane %v2154, 1
        %v2156 = vadd.f32 %v2154, %v2155
        %v2157 = vadd.f32 %v2098, %v2101
        %v2158 = vrot.slane %v2157, 4
        %v2159 = vadd.f32 %v2157, %v2158
        %v2160 = vrot.slane %v2159, 2
        %v2161 = vadd.f32 %v2159, %v2160
        %v2162 = vrot.slane %v2161, 1
        %v2163 = vadd.f32 %v2161, %v2162
        %v2164 = vadd.f32 %v2106, %v2109
        %v2165 = vrot.slane %v2164, 4
        %v2166 = vadd.f32 %v2164, %v2165
        %v2167 = vrot.slane %v2166, 2
        %v2168 = vadd.f32 %v2166, %v2167
        %v2169 = vrot.slane %v2168, 1
        %v2170 = vadd.f32 %v2168, %v2169
        %v2171 = vadd.f32 %v2114, %v2117
        %v2172 = vrot.slane %v2171, 4
        %v2173 = vadd.f32 %v2171, %v2172
        %v2174 = vrot.slane %v2173, 2
        %v2175 = vadd.f32 %v2173, %v2174
        %v2176 = vrot.slane %v2175, 1
        %v2177 = vadd.f32 %v2175, %v2176
        %v2178 = vadd.f32 %v2122, %v2125
        %v2179 = vrot.slane %v2178, 4
        %v2180 = vadd.f32 %v2178, %v2179
        %v2181 = vrot.slane %v2180, 2
        %v2182 = vadd.f32 %v2180, %v2181
        %v2183 = vrot.slane %v2182, 1
        %v2184 = vadd.f32 %v2182, %v2183
        %v2185 = vadd.f32 %v2130, %v2133
        %v2186 = vrot.slane %v2185, 4
        %v2187 = vadd.f32 %v2185, %v2186
        %v2188 = vrot.slane %v2187, 2
        %v2189 = vadd.f32 %v2187, %v2188
        %v2190 = vrot.slane %v2189, 1
        %v2191 = vadd.f32 %v2189, %v2190
        %v2192 = vmul.f32 %v2074, %v2074
        %v2193 = vmul.f32 %v2077, %v2077
        %v2194 = vmul.f32 %v2082, %v2082
        %v2195 = vmul.f32 %v2085, %v2085
        %v2196 = vmul.f32 %v2090, %v2090
        %v2197 = vmul.f32 %v2093, %v2093
        %v2198 = vmul.f32 %v2098, %v2098
        %v2199 = vmul.f32 %v2101, %v2101
        %v2200 = vmul.f32 %v2106, %v2106
        %v2201 = vmul.f32 %v2109, %v2109
        %v2202 = vmul.f32 %v2114, %v2114
        %v2203 = vmul.f32 %v2117, %v2117
        %v2204 = vmul.f32 %v2122, %v2122
        %v2205 = vmul.f32 %v2125, %v2125
        %v2206 = vmul.f32 %v2130, %v2130
        %v2207 = vmul.f32 %v2133, %v2133
        %v2208 = vadd.f32 %v2192, %v2193
        %v2209 = vrot.slane %v2208, 4
        %v2210 = vadd.f32 %v2208, %v2209
        %v2211 = vrot.slane %v2210, 2
        %v2212 = vadd.f32 %v2210, %v2211
        %v2213 = vrot.slane %v2212, 1
        %v2214 = vadd.f32 %v2212, %v2213
        %v2215 = vadd.f32 %v2194, %v2195
        %v2216 = vrot.slane %v2215, 4
        %v2217 = vadd.f32 %v2215, %v2216
        %v2218 = vrot.slane %v2217, 2
        %v2219 = vadd.f32 %v2217, %v2218
        %v2220 = vrot.slane %v2219, 1
        %v2221 = vadd.f32 %v2219, %v2220
        %v2222 = vadd.f32 %v2196, %v2197
        %v2223 = vrot.slane %v2222, 4
        %v2224 = vadd.f32 %v2222, %v2223
        %v2225 = vrot.slane %v2224, 2
        %v2226 = vadd.f32 %v2224, %v2225
        %v2227 = vrot.slane %v2226, 1
        %v2228 = vadd.f32 %v2226, %v2227
        %v2229 = vadd.f32 %v2198, %v2199
        %v2230 = vrot.slane %v2229, 4
        %v2231 = vadd.f32 %v2229, %v2230
        %v2232 = vrot.slane %v2231, 2
        %v2233 = vadd.f32 %v2231, %v2232
        %v2234 = vrot.slane %v2233, 1
        %v2235 = vadd.f32 %v2233, %v2234
        %v2236 = vadd.f32 %v2200, %v2201
        %v2237 = vrot.slane %v2236, 4
        %v2238 = vadd.f32 %v2236, %v2237
        %v2239 = vrot.slane %v2238, 2
        %v2240 = vadd.f32 %v2238, %v2239
        %v2241 = vrot.slane %v2240, 1
        %v2242 = vadd.f32 %v2240, %v2241
        %v2243 = vadd.f32 %v2202, %v2203
        %v2244 = vrot.slane %v2243, 4
        %v2245 = vadd.f32 %v2243, %v2244
        %v2246 = vrot.slane %v2245, 2
        %v2247 = vadd.f32 %v2245, %v2246
        %v2248 = vrot.slane %v2247, 1
        %v2249 = vadd.f32 %v2247, %v2248
        %v2250 = vadd.f32 %v2204, %v2205
        %v2251 = vrot.slane %v2250, 4
        %v2252 = vadd.f32 %v2250, %v2251
        %v2253 = vrot.slane %v2252, 2
        %v2254 = vadd.f32 %v2252, %v2253
        %v2255 = vrot.slane %v2254, 1
        %v2256 = vadd.f32 %v2254, %v2255
        %v2257 = vadd.f32 %v2206, %v2207
        %v2258 = vrot.slane %v2257, 4
        %v2259 = vadd.f32 %v2257, %v2258
        %v2260 = vrot.slane %v2259, 2
        %v2261 = vadd.f32 %v2259, %v2260
        %v2262 = vrot.slane %v2261, 1
        %v2263 = vadd.f32 %v2261, %v2262
        %v2272 = vsel %vm991, %v2149, %v2142
        %v2273 = vsel %vm993, %v2156, %v2272
        %v2274 = vsel %vm995, %v2163, %v2273
        %v2275 = vsel %vm997, %v2170, %v2274
        %v2276 = vsel %vm999, %v2177, %v2275
        %v2277 = vsel %vm1001, %v2184, %v2276
        %v2278 = vsel %vm1003, %v2191, %v2277
        %v2288 = vsel %vm991, %v2221, %v2214
        %v2289 = vsel %vm993, %v2228, %v2288
        %v2290 = vsel %vm995, %v2235, %v2289
        %v2291 = vsel %vm997, %v2242, %v2290
        %v2292 = vsel %vm999, %v2249, %v2291
        %v2293 = vsel %vm1001, %v2256, %v2292
        %v2294 = vsel %vm1003, %v2263, %v2293
        %2296 = vmatprep.subr.mxu0 0.0
        %2297 = vmatpush1.msra.mxu0 %v1022
        %2298 = vmatprep.subr.mxu0 0.0
        %2299 = vmatpush1.msra.mxu0 %v1023
        %2300 = vmatprep.subr.mxu0 0.0
        %2301 = vmatpush1.msra.mxu0 %v1024
        %2302 = vmatprep.subr.mxu0 0.0
        %2303 = vmatpush1.msra.mxu0 %v1025
        %2304 = vmatprep.subr.mxu0 0.0
        %2305 = vmatpush1.msra.mxu0 %v1026
        %2306 = vmatprep.subr.mxu0 0.0
        %2307 = vmatpush1.msra.mxu0 %v1027
        %2308 = vmatprep.subr.mxu0 0.0
        %2309 = vmatpush1.msra.mxu0 %v1028
        %2310 = vmatprep.subr.mxu0 0.0
        %2311 = vmatpush1.msra.mxu0 %v1029
        %2312 = vmatprep.subr.mxu0 0.0
        %2313 = vmatpush1.msra.mxu0 %v1030
        %2314 = vmatprep.subr.mxu0 0.0
        %2315 = vmatpush1.msra.mxu0 %v1031
        %2316 = vmatprep.subr.mxu0 0.0
        %2317 = vmatpush1.msra.mxu0 %v1032
        %2318 = vmatprep.subr.mxu0 0.0
        %2319 = vmatpush1.msra.mxu0 %v1033
        %2320 = vmatprep.subr.mxu0 0.0
        %2321 = vmatpush1.msra.mxu0 %v1034
        %2322 = vmatprep.subr.mxu0 0.0
        %2323 = vmatpush1.msra.mxu0 %v1035
        %2324 = vmatprep.subr.mxu0 0.0
        %2325 = vmatpush1.msra.mxu0 %v1036
        %2326 = vmatprep.subr.mxu0 0.0
        %2327 = vmatpush1.msra.mxu0 %v1037
        %2328 = vmatprep.subr.mxu0 0.0
        %2329 = vmatpush1.msra.mxu0 0.0
        %2330 = vmatprep.subr.mxu0 0.0
        %2331 = vmatpush1.msra.mxu0 0.0
        %2332 = vmatprep.subr.mxu0 0.0
        %2333 = vmatpush1.msra.mxu0 0.0
        %2334 = vmatprep.subr.mxu0 0.0
        %2335 = vmatpush1.msra.mxu0 0.0
        %2336 = vmatprep.subr.mxu0 0.0
        %2337 = vmatpush1.msra.mxu0 0.0
        %2338 = vmatprep.subr.mxu0 0.0
        %2339 = vmatpush1.msra.mxu0 0.0
        %2340 = vmatprep.subr.mxu0 0.0
        %2341 = vmatpush1.msra.mxu0 0.0
        %2342 = vmatprep.subr.mxu0 0.0
        %2343 = vmatpush1.msra.mxu0 0.0
        %2344 = vmatprep.subr.mxu0 0.0
        %2345 = vmatpush1.msra.mxu0 0.0
        %2346 = vmatprep.subr.mxu0 0.0
        %2347 = vmatpush1.msra.mxu0 0.0
        %2348 = vmatprep.subr.mxu0 0.0
        %2349 = vmatpush1.msra.mxu0 0.0
        %2350 = vmatprep.subr.mxu0 0.0
        %2351 = vmatpush1.msra.mxu0 0.0
        %2352 = vmatprep.subr.mxu0 0.0
        %2353 = vmatpush1.msra.mxu0 0.0
        %2354 = vmatprep.subr.mxu0 0.0
        %2355 = vmatpush1.msra.mxu0 0.0
        %2356 = vmatprep.subr.mxu0 0.0
        %2357 = vmatpush1.msra.mxu0 0.0
        %2358 = vmatprep.subr.mxu0 0.0
        %2359 = vmatpush1.msra.mxu0 0.0
        %2360 = vmatprep.mubr.f32.mxu0 0.0
        %2361 = vmatmul.mubr.f32.gmra.mrb[0].mxu0 %v2278
        %v2362 = vpop.f32.mrb[0].mxu0
        %v2363 = vadd.f32 0.0, %v2362
        %v2364 = vpop.f32.mrb[0].mxu0
        %2365 = vmatprep.mubr.f32.mxu0 0.0
        %2366 = vmatmul.mubr.f32.gmra.mrb[0].mxu0 %v2294
        %v2367 = vpop.f32.mrb[0].mxu0
        %v2368 = vadd.f32 0.0, %v2367
        %v2369 = vpop.f32.mrb[0].mxu0
        %2370 = vdwg.mxu0
        %v2371 = vmul.f32 %v2363, 0.00390625
        %v2372 = vmul.f32 %v2368, 0.00390625
        %v2373 = vmul.f32 %v2371, %v2371
        %v2374 = vsub.f32 %v2372, %v2373
        %v2375 = vmax.f32 %v2374, 0.0
        %v2377 = vsel %vm1119, %v2371, 0
        %v2380 = vsel %vm1119, %v2375, 0
        %2382 = vmatprep.subr.mxu0 0.0
        %2383 = vmatpush1.msra.mxu0 %v1118
        %2384 = vmatprep.subr.mxu0 0.0
        %2385 = vmatpush1.msra.mxu0 0.0
        %2386 = vmatprep.subr.mxu0 0.0
        %2387 = vmatpush1.msra.mxu0 0.0
        %2388 = vmatprep.subr.mxu0 0.0
        %2389 = vmatpush1.msra.mxu0 0.0
        %2390 = vmatprep.subr.mxu0 0.0
        %2391 = vmatpush1.msra.mxu0 0.0
        %2392 = vmatprep.subr.mxu0 0.0
        %2393 = vmatpush1.msra.mxu0 0.0
        %2394 = vmatprep.subr.mxu0 0.0
        %2395 = vmatpush1.msra.mxu0 0.0
        %2396 = vmatprep.subr.mxu0 0.0
        %2397 = vmatpush1.msra.mxu0 0.0
        %2398 = vmatprep.subr.mxu0 0.0
        %2399 = vmatpush1.msra.mxu0 0.0
        %2400 = vmatprep.subr.mxu0 0.0
        %2401 = vmatpush1.msra.mxu0 0.0
        %2402 = vmatprep.subr.mxu0 0.0
        %2403 = vmatpush1.msra.mxu0 0.0
        %2404 = vmatprep.subr.mxu0 0.0
        %2405 = vmatpush1.msra.mxu0 0.0
        %2406 = vmatprep.subr.mxu0 0.0
        %2407 = vmatpush1.msra.mxu0 0.0
        %2408 = vmatprep.subr.mxu0 0.0
        %2409 = vmatpush1.msra.mxu0 0.0
        %2410 = vmatprep.subr.mxu0 0.0
        %2411 = vmatpush1.msra.mxu0 0.0
        %2412 = vmatprep.subr.mxu0 0.0
        %2413 = vmatpush1.msra.mxu0 0.0
        %2414 = vmatprep.subr.mxu0 0.0
        %2415 = vmatpush1.msra.mxu0 0.0
        %2416 = vmatprep.subr.mxu0 0.0
        %2417 = vmatpush1.msra.mxu0 0.0
        %2418 = vmatprep.subr.mxu0 0.0
        %2419 = vmatpush1.msra.mxu0 0.0
        %2420 = vmatprep.subr.mxu0 0.0
        %2421 = vmatpush1.msra.mxu0 0.0
        %2422 = vmatprep.subr.mxu0 0.0
        %2423 = vmatpush1.msra.mxu0 0.0
        %2424 = vmatprep.subr.mxu0 0.0
        %2425 = vmatpush1.msra.mxu0 0.0
        %2426 = vmatprep.subr.mxu0 0.0
        %2427 = vmatpush1.msra.mxu0 0.0
        %2428 = vmatprep.subr.mxu0 0.0
        %2429 = vmatpush1.msra.mxu0 0.0
        %2430 = vmatprep.subr.mxu0 0.0
        %2431 = vmatpush1.msra.mxu0 0.0
        %2432 = vmatprep.subr.mxu0 0.0
        %2433 = vmatpush1.msra.mxu0 0.0
        %2434 = vmatprep.subr.mxu0 0.0
        %2435 = vmatpush1.msra.mxu0 0.0
        %2436 = vmatprep.subr.mxu0 0.0
        %2437 = vmatpush1.msra.mxu0 0.0
        %2438 = vmatprep.subr.mxu0 0.0
        %2439 = vmatpush1.msra.mxu0 0.0
        %2440 = vmatprep.subr.mxu0 0.0
        %2441 = vmatpush1.msra.mxu0 0.0
        %2442 = vmatprep.subr.mxu0 0.0
        %2443 = vmatpush1.msra.mxu0 0.0
        %2444 = vmatprep.subr.mxu0 0.0
        %2445 = vmatpush1.msra.mxu0 0.0
        %2446 = vmatprep.mubr.f32.mxu0 0.0
        %2447 = vmatmul.mubr.f32.gmra.mrb[0].mxu0 %v2377
        %v2448 = vpop.f32.mrb[0].mxu0
        %v2449 = vadd.f32 0.0, %v2448
        %v2450 = vpop.f32.mrb[0].mxu0
        %2451 = vmatprep.mubr.f32.mxu0 0.0
        %2452 = vmatmul.mubr.f32.gmra.mrb[0].mxu0 %v2380
        %v2453 = vpop.f32.mrb[0].mxu0
        %v2454 = vadd.f32 0.0, %v2453
        %v2455 = vpop.f32.mrb[0].mxu0
        %2456 = vdwg.mxu0
        %v2458 = vcombine.high %v2449, %v2449
        %v2460 = vunpack.c.l.s4 1966171168
        %v2461 = vunpack.c.0.s8 %v2460
        %v2462 = vlaneseq
        %v2463 = vshrl.u32 %v2462, 7
        %v2464 = vsub.s32 %v2461, %v2463
        %v2465 = vrot.slane %v2449, %v2464
        %v2467 = vunpack.c.l.s4 1966171168
        %v2468 = vunpack.c.0.s8 %v2467
        %v2469 = vlaneseq
        %v2470 = vshrl.u32 %v2469, 7
        %v2471 = vsub.s32 %v2468, %v2470
        %v2472 = vrot.slane %v2458, %v2471
        %v2473 = vcombine.high %v2465, %v2465
        %v2474 = vcombine.high %v2472, %v2472
        %v2476 = vunpack.c.l.s4 1966171168
        %v2477 = vunpack.c.0.s8 %v2476
        %v2478 = vlaneseq
        %v2479 = vshrl.u32 %v2478, 7
        %v2480 = vsub.s32 %v2477, %v2479
        %v2481 = vrot.slane %v2465, %v2480
        %v2483 = vunpack.c.l.s4 1966171168
        %v2484 = vunpack.c.0.s8 %v2483
        %v2485 = vlaneseq
        %v2486 = vshrl.u32 %v2485, 7
        %v2487 = vsub.s32 %v2484, %v2486
        %v2488 = vrot.slane %v2472, %v2487
        %v2490 = vunpack.c.l.s4 1966171168
        %v2491 = vunpack.c.0.s8 %v2490
        %v2492 = vlaneseq
        %v2493 = vshrl.u32 %v2492, 7
        %v2494 = vsub.s32 %v2491, %v2493
        %v2495 = vrot.slane %v2473, %v2494
        %v2497 = vunpack.c.l.s4 1966171168
        %v2498 = vunpack.c.0.s8 %v2497
        %v2499 = vlaneseq
        %v2500 = vshrl.u32 %v2499, 7
        %v2501 = vsub.s32 %v2498, %v2500
        %v2502 = vrot.slane %v2474, %v2501
        %v2503 = vcombine.high %v2481, %v2481
        %v2504 = vcombine.high %v2488, %v2488
        %v2505 = vcombine.high %v2495, %v2495
        %v2506 = vcombine.high %v2502, %v2502
        %v2507 = vadd.f32 %v2454, 1e-05
        %v2508 = vrsqrt.pop %v2507
        %v2510 = vcombine.high %v2508, %v2508
        %v2512 = vunpack.c.l.s4 1966171168
        %v2513 = vunpack.c.0.s8 %v2512
        %v2514 = vlaneseq
        %v2515 = vshrl.u32 %v2514, 7
        %v2516 = vsub.s32 %v2513, %v2515
        %v2517 = vrot.slane %v2508, %v2516
        %v2519 = vunpack.c.l.s4 1966171168
        %v2520 = vunpack.c.0.s8 %v2519
        %v2521 = vlaneseq
        %v2522 = vshrl.u32 %v2521, 7
        %v2523 = vsub.s32 %v2520, %v2522
        %v2524 = vrot.slane %v2510, %v2523
        %v2525 = vcombine.high %v2517, %v2517
        %v2526 = vcombine.high %v2524, %v2524
        %v2528 = vunpack.c.l.s4 1966171168
        %v2529 = vunpack.c.0.s8 %v2528
        %v2530 = vlaneseq
        %v2531 = vshrl.u32 %v2530, 7
        %v2532 = vsub.s32 %v2529, %v2531
        %v2533 = vrot.slane %v2517, %v2532
        %v2535 = vunpack.c.l.s4 1966171168
        %v2536 = vunpack.c.0.s8 %v2535
        %v2537 = vlaneseq
        %v2538 = vshrl.u32 %v2537, 7
        %v2539 = vsub.s32 %v2536, %v2538
        %v2540 = vrot.slane %v2524, %v2539
        %v2542 = vunpack.c.l.s4 1966171168
        %v2543 = vunpack.c.0.s8 %v2542
        %v2544 = vlaneseq
        %v2545 = vshrl.u32 %v2544, 7
        %v2546 = vsub.s32 %v2543, %v2545
        %v2547 = vrot.slane %v2525, %v2546
        %v2549 = vunpack.c.l.s4 1966171168
        %v2550 = vunpack.c.0.s8 %v2549
        %v2551 = vlaneseq
        %v2552 = vshrl.u32 %v2551, 7
        %v2553 = vsub.s32 %v2550, %v2552
        %v2554 = vrot.slane %v2526, %v2553
        %v2555 = vcombine.high %v2533, %v2533
        %v2556 = vcombine.high %v2540, %v2540
        %v2557 = vcombine.high %v2547, %v2547
        %v2558 = vcombine.high %v2554, %v2554
        %v2559 = vlaneseq
        %v2560 = vshrl.u32 %v2559, 7
        %v2561 = vsub.s32 0, %v2560
        %v2562 = vrot.slane %v2481, %v2561
        %v2563 = vlaneseq
        %v2564 = vshrl.u32 %v2563, 7
        %v2565 = vsub.s32 0, %v2564
        %v2566 = vrot.slane %v2495, %v2565
        %v2567 = vlaneseq
        %v2568 = vshrl.u32 %v2567, 7
        %v2569 = vsub.s32 0, %v2568
        %v2570 = vrot.slane %v2503, %v2569
        %v2571 = vlaneseq
        %v2572 = vshrl.u32 %v2571, 7
        %v2573 = vsub.s32 0, %v2572
        %v2574 = vrot.slane %v2505, %v2573
        %v2575 = vlaneseq
        %v2576 = vshrl.u32 %v2575, 7
        %v2577 = vsub.s32 0, %v2576
        %v2578 = vrot.slane %v2488, %v2577
        %v2579 = vlaneseq
        %v2580 = vshrl.u32 %v2579, 7
        %v2581 = vsub.s32 0, %v2580
        %v2582 = vrot.slane %v2502, %v2581
        %v2583 = vlaneseq
        %v2584 = vshrl.u32 %v2583, 7
        %v2585 = vsub.s32 0, %v2584
        %v2586 = vrot.slane %v2504, %v2585
        %v2587 = vlaneseq
        %v2588 = vshrl.u32 %v2587, 7
        %v2589 = vsub.s32 0, %v2588
        %v2590 = vrot.slane %v2506, %v2589
        %v2599 = vsub.f32 %v2074, %v2562
        %v2600 = vsub.f32 %v2077, %v2562
        %v2601 = vsub.f32 %v2082, %v2566
        %v2602 = vsub.f32 %v2085, %v2566
        %v2603 = vsub.f32 %v2090, %v2570
        %v2604 = vsub.f32 %v2093, %v2570
        %v2605 = vsub.f32 %v2098, %v2574
        %v2606 = vsub.f32 %v2101, %v2574
        %v2607 = vsub.f32 %v2106, %v2578
        %v2608 = vsub.f32 %v2109, %v2578
        %v2609 = vsub.f32 %v2114, %v2582
        %v2610 = vsub.f32 %v2117, %v2582
        %v2611 = vsub.f32 %v2122, %v2586
        %v2612 = vsub.f32 %v2125, %v2586
        %v2613 = vsub.f32 %v2130, %v2590
        %v2614 = vsub.f32 %v2133, %v2590
        %v2615 = vlaneseq
        %v2616 = vshrl.u32 %v2615, 7
        %v2617 = vsub.s32 0, %v2616
        %v2618 = vrot.slane %v2533, %v2617
        %v2619 = vlaneseq
        %v2620 = vshrl.u32 %v2619, 7
        %v2621 = vsub.s32 0, %v2620
        %v2622 = vrot.slane %v2547, %v2621
        %v2623 = vlaneseq
        %v2624 = vshrl.u32 %v2623, 7
        %v2625 = vsub.s32 0, %v2624
        %v2626 = vrot.slane %v2555, %v2625
        %v2627 = vlaneseq
        %v2628 = vshrl.u32 %v2627, 7
        %v2629 = vsub.s32 0, %v2628
        %v2630 = vrot.slane %v2557, %v2629
        %v2631 = vlaneseq
        %v2632 = vshrl.u32 %v2631, 7
        %v2633 = vsub.s32 0, %v2632
        %v2634 = vrot.slane %v2540, %v2633
        %v2635 = vlaneseq
        %v2636 = vshrl.u32 %v2635, 7
        %v2637 = vsub.s32 0, %v2636
        %v2638 = vrot.slane %v2554, %v2637
        %v2639 = vlaneseq
        %v2640 = vshrl.u32 %v2639, 7
        %v2641 = vsub.s32 0, %v2640
        %v2642 = vrot.slane %v2556, %v2641
        %v2643 = vlaneseq
        %v2644 = vshrl.u32 %v2643, 7
        %v2645 = vsub.s32 0, %v2644
        %v2646 = vrot.slane %v2558, %v2645
        %v2655 = vmul.f32 %v2599, %v2618
        %v2656 = vmul.f32 %v2600, %v2618
        %v2657 = vmul.f32 %v2601, %v2622
        %v2658 = vmul.f32 %v2602, %v2622
        %v2659 = vmul.f32 %v2603, %v2626
        %v2660 = vmul.f32 %v2604, %v2626
        %v2661 = vmul.f32 %v2605, %v2630
        %v2662 = vmul.f32 %v2606, %v2630
        %v2663 = vmul.f32 %v2607, %v2634
        %v2664 = vmul.f32 %v2608, %v2634
        %v2665 = vmul.f32 %v2609, %v2638
        %v2666 = vmul.f32 %v2610, %v2638
        %v2667 = vmul.f32 %v2611, %v2642
        %v2668 = vmul.f32 %v2612, %v2642
        %v2669 = vmul.f32 %v2613, %v2646
        %v2670 = vmul.f32 %v2614, %v2646
        %v2671 = vld [vmem:[#allocation7 + $0x1] sm:$0x1]
        %v2672 = vlaneseq
        %v2673 = vshrl.u32 %v2672, 7
        %v2674 = vsub.s32 0, %v2673
        %v2675 = vrot.slane %v2671, %v2674
        %v2676 = vmul.f32 %v2655, %v2675
        %v2677 = vmul.f32 %v2656, %v2675
        %v2678 = vmul.f32 %v2657, %v2675
        %v2679 = vmul.f32 %v2658, %v2675
        %v2680 = vmul.f32 %v2659, %v2675
        %v2681 = vmul.f32 %v2660, %v2675
        %v2682 = vmul.f32 %v2661, %v2675
        %v2683 = vmul.f32 %v2662, %v2675
        %v2684 = vmul.f32 %v2663, %v2675
        %v2685 = vmul.f32 %v2664, %v2675
        %v2686 = vmul.f32 %v2665, %v2675
        %v2687 = vmul.f32 %v2666, %v2675
        %v2688 = vmul.f32 %v2667, %v2675
        %v2689 = vmul.f32 %v2668, %v2675
        %v2690 = vmul.f32 %v2669, %v2675
        %v2691 = vmul.f32 %v2670, %v2675
        %v2692 = vld [vmem:[#allocation7 + $0x2] sm:$0x1]
        %v2693 = vlaneseq
        %v2694 = vshrl.u32 %v2693, 7
        %v2695 = vsub.s32 0, %v2694
        %v2696 = vrot.slane %v2692, %v2695
        %v2697 = vadd.f32 %v2676, %v2696
        %v2698 = vadd.f32 %v2677, %v2696
        %v2699 = vadd.f32 %v2678, %v2696
        %v2700 = vadd.f32 %v2679, %v2696
        %v2701 = vadd.f32 %v2680, %v2696
        %v2702 = vadd.f32 %v2681, %v2696
        %v2703 = vadd.f32 %v2682, %v2696
        %v2704 = vadd.f32 %v2683, %v2696
        %v2705 = vadd.f32 %v2684, %v2696
        %v2706 = vadd.f32 %v2685, %v2696
        %v2707 = vadd.f32 %v2686, %v2696
        %v2708 = vadd.f32 %v2687, %v2696
        %v2709 = vadd.f32 %v2688, %v2696
        %v2710 = vadd.f32 %v2689, %v2696
        %v2711 = vadd.f32 %v2690, %v2696
        %v2712 = vadd.f32 %v2691, %v2696
        %v2713 = vxor.u32 %v2697, 2147483648
        %v2714 = vxor.u32 %v2698, 2147483648
        %v2715 = vxor.u32 %v2699, 2147483648
        %v2716 = vxor.u32 %v2700, 2147483648
        %v2717 = vxor.u32 %v2701, 2147483648
        %v2718 = vxor.u32 %v2702, 2147483648
        %v2719 = vxor.u32 %v2703, 2147483648
        %v2720 = vxor.u32 %v2704, 2147483648
        %v2721 = vxor.u32 %v2705, 2147483648
        %v2722 = vxor.u32 %v2706, 2147483648
        %v2723 = vxor.u32 %v2707, 2147483648
        %v2724 = vxor.u32 %v2708, 2147483648
        %v2725 = vxor.u32 %v2709, 2147483648
        %v2726 = vxor.u32 %v2710, 2147483648
        %v2727 = vxor.u32 %v2711, 2147483648
        %v2728 = vxor.u32 %v2712, 2147483648
        %v2729 = vmul.f32 %v2713, 1.442695
        %v2730 = vpow.pop %v2729
        %v2731 = vmul.f32 %v2714, 1.442695
        %v2732 = vpow.pop %v2731
        %v2733 = vmul.f32 %v2715, 1.442695
        %v2734 = vpow.pop %v2733
        %v2735 = vmul.f32 %v2716, 1.442695
        %v2736 = vpow.pop %v2735
        %v2737 = vmul.f32 %v2717, 1.442695
        %v2738 = vpow.pop %v2737
        %v2739 = vmul.f32 %v2718, 1.442695
        %v2740 = vpow.pop %v2739
        %v2741 = vmul.f32 %v2719, 1.442695
        %v2742 = vpow.pop %v2741
        %v2743 = vmul.f32 %v2720, 1.442695
        %v2744 = vpow.pop %v2743
        %v2745 = vmul.f32 %v2721, 1.442695
        %v2746 = vpow.pop %v2745
        %v2747 = vmul.f32 %v2722, 1.442695
        %v2748 = vpow.pop %v2747
        %v2749 = vmul.f32 %v2723, 1.442695
        %v2750 = vpow.pop %v2749
        %v2751 = vmul.f32 %v2724, 1.442695
        %v2752 = vpow.pop %v2751
        %v2753 = vmul.f32 %v2725, 1.442695
        %v2754 = vpow.pop %v2753
        %v2755 = vmul.f32 %v2726, 1.442695
        %v2756 = vpow.pop %v2755
        %v2757 = vmul.f32 %v2727, 1.442695
        %v2758 = vpow.pop %v2757
        %v2759 = vmul.f32 %v2728, 1.442695
        %v2760 = vpow.pop %v2759
        %v2761 = vadd.f32 %v2730, 1.0
        %v2762 = vadd.f32 %v2732, 1.0
        %v2763 = vadd.f32 %v2734, 1.0
        %v2764 = vadd.f32 %v2736, 1.0
        %v2765 = vadd.f32 %v2738, 1.0
        %v2766 = vadd.f32 %v2740, 1.0
        %v2767 = vadd.f32 %v2742, 1.0
        %v2768 = vadd.f32 %v2744, 1.0
        %v2769 = vadd.f32 %v2746, 1.0
        %v2770 = vadd.f32 %v2748, 1.0
        %v2771 = vadd.f32 %v2750, 1.0
        %v2772 = vadd.f32 %v2752, 1.0
        %v2773 = vadd.f32 %v2754, 1.0
        %v2774 = vadd.f32 %v2756, 1.0
        %v2775 = vadd.f32 %v2758, 1.0
        %v2776 = vadd.f32 %v2760, 1.0
        %v2777 = vrcp.pop %v2761
        %v2778 = vmul.f32 1.0, %v2777
        %v2779 = vrcp.pop %v2762
        %v2780 = vmul.f32 1.0, %v2779
        %v2781 = vrcp.pop %v2763
        %v2782 = vmul.f32 1.0, %v2781
        %v2783 = vrcp.pop %v2764
        %v2784 = vmul.f32 1.0, %v2783
        %v2785 = vrcp.pop %v2765
        %v2786 = vmul.f32 1.0, %v2785
        %v2787 = vrcp.pop %v2766
        %v2788 = vmul.f32 1.0, %v2787
        %v2789 = vrcp.pop %v2767
        %v2790 = vmul.f32 1.0, %v2789
        %v2791 = vrcp.pop %v2768
        %v2792 = vmul.f32 1.0, %v2791
        %v2793 = vrcp.pop %v2769
        %v2794 = vmul.f32 1.0, %v2793
        %v2795 = vrcp.pop %v2770
        %v2796 = vmul.f32 1.0, %v2795
        %v2797 = vrcp.pop %v2771
        %v2798 = vmul.f32 1.0, %v2797
        %v2799 = vrcp.pop %v2772
        %v2800 = vmul.f32 1.0, %v2799
        %v2801 = vrcp.pop %v2773
        %v2802 = vmul.f32 1.0, %v2801
        %v2803 = vrcp.pop %v2774
        %v2804 = vmul.f32 1.0, %v2803
        %v2805 = vrcp.pop %v2775
        %v2806 = vmul.f32 1.0, %v2805
        %v2807 = vrcp.pop %v2776
        %v2808 = vmul.f32 1.0, %v2807
        %v2809 = vmul.f32 %v2697, %v2778
        %v2810 = vmul.f32 %v2698, %v2780
        %v2811 = vmul.f32 %v2699, %v2782
        %v2812 = vmul.f32 %v2700, %v2784
        %v2813 = vmul.f32 %v2701, %v2786
        %v2814 = vmul.f32 %v2702, %v2788
        %v2815 = vmul.f32 %v2703, %v2790
        %v2816 = vmul.f32 %v2704, %v2792
        %v2817 = vmul.f32 %v2705, %v2794
        %v2818 = vmul.f32 %v2706, %v2796
        %v2819 = vmul.f32 %v2707, %v2798
        %v2820 = vmul.f32 %v2708, %v2800
        %v2821 = vmul.f32 %v2709, %v2802
        %v2822 = vmul.f32 %v2710, %v2804
        %v2823 = vmul.f32 %v2711, %v2806
        %v2824 = vmul.f32 %v2712, %v2808
        %v2825 = vpack.c.bf16 %v383, %v382
        %v2826 = vpack.c.bf16 %v385, %v384
        %v2827 = vpack.c.bf16 %v387, %v386
        %v2828 = vpack.c.bf16 %v389, %v388
        %v2829 = vpack.c.bf16 %v391, %v390
        %v2830 = vpack.c.bf16 %v393, %v392
        %v2831 = vpack.c.bf16 %v395, %v394
        %v2832 = vpack.c.bf16 %v397, %v396
        %v2833 = vld [vmem:[%s5] sm:$0xf]
        %v2834 = vld [vmem:[%s5 + $0x4] sm:$0xf]
        %v2835 = vld [vmem:[%s5 + $0x8] sm:$0xf]
        %v2836 = vld [vmem:[%s5 + $0xc] sm:$0xf]
        %v2837 = vld [vmem:[%s5 + $0x10] sm:$0xf]
        %v2838 = vld [vmem:[%s5 + $0x14] sm:$0xf]
        %v2839 = vld [vmem:[%s5 + $0x18] sm:$0xf]
        %v2840 = vld [vmem:[%s5 + $0x1c] sm:$0xf]
        %v2841 = vld [vmem:[%s6] sm:$0x1]
        %v2843 = vlaneseq
        %v2844 = vshrl.u32 %v2843, 7
        %v2845 = vsub.s32 0, %v2844
        %v2846 = vrot.slane %v2841, %v2845
        %v2856 = vunpack.c.l.b16 %v2833
        %v2857 = vunpack.c.l.b16 %v2834
        %v2858 = vunpack.c.l.b16 %v2835
        %v2859 = vunpack.c.l.b16 %v2836
        %v2860 = vunpack.c.l.b16 %v2837
        %v2861 = vunpack.c.l.b16 %v2838
        %v2862 = vunpack.c.l.b16 %v2839
        %v2863 = vunpack.c.l.b16 %v2840
        %v2864 = vpack.c.b16 %v2857, %v2856
        %v2865 = vpack.c.b16 %v2859, %v2858
        %v2866 = vpack.c.b16 %v2861, %v2860
        %v2867 = vpack.c.b16 %v2863, %v2862
        %v2873 = vsel %vm600, %v2825, 0
        %v2876 = vsel %vm600, %v2826, 0
        %v2879 = vsel %vm600, %v2827, 0
        %v2882 = vsel %vm600, %v2828, 0
        %v2885 = vsel %vm600, %v2829, 0
        %v2888 = vsel %vm600, %v2830, 0
        %v2891 = vsel %vm600, %v2831, 0
        %v2894 = vsel %vm600, %v2832, 0
        %2896 = vmatprep.subr.bf16.mxu0 0
        %2897 = vmatpush1.bf16.msra.mxu0 %v2864
        %2898 = vmatprep.subr.bf16.mxu0 0
        %2899 = vmatpush1.bf16.msra.mxu0 %v2865
        %2900 = vmatprep.subr.bf16.mxu0 0
        %2901 = vmatpush1.bf16.msra.mxu0 %v2866
        %2902 = vmatprep.subr.bf16.mxu0 0
        %2903 = vmatpush1.bf16.msra.mxu0 %v2867
        %2904 = vmatprep.subr.bf16.mxu0 0
        %2905 = vmatpush1.bf16.msra.mxu0 0
        %2906 = vmatprep.subr.bf16.mxu0 0
        %2907 = vmatpush1.bf16.msra.mxu0 0
        %2908 = vmatprep.subr.bf16.mxu0 0
        %2909 = vmatpush1.bf16.msra.mxu0 0
        %2910 = vmatprep.subr.bf16.mxu0 0
        %2911 = vmatpush1.bf16.msra.mxu0 0
        %2912 = vmatprep.subr.bf16.mxu0 0
        %2913 = vmatpush1.bf16.msra.mxu0 0
        %2914 = vmatprep.subr.bf16.mxu0 0
        %2915 = vmatpush1.bf16.msra.mxu0 0
        %2916 = vmatprep.subr.bf16.mxu0 0
        %2917 = vmatpush1.bf16.msra.mxu0 0
        %2918 = vmatprep.subr.bf16.mxu0 0
        %2919 = vmatpush1.bf16.msra.mxu0 0
        %2920 = vmatprep.subr.bf16.mxu0 0
        %2921 = vmatpush1.bf16.msra.mxu0 0
        %2922 = vmatprep.subr.bf16.mxu0 0
        %2923 = vmatpush1.bf16.msra.mxu0 0
        %2924 = vmatprep.subr.bf16.mxu0 0
        %2925 = vmatpush1.bf16.msra.mxu0 0
        %2926 = vmatprep.subr.bf16.mxu0 0
        %2927 = vmatpush1.bf16.msra.mxu0 0
        %2928 = vmatprep.mubr.bf16.mxu0 0
        %2929 = vmatmul.mubr.bf16.gmra.mrb[0].mxu0 %v2873
        %v2930 = vpop.f32.mrb[0].mxu0
        %v2931 = vadd.f32 %v2846, %v2930
        %v2932 = vpop.f32.mrb[0].mxu0
        %v2933 = vpop.f32.mrb[0].mxu0
        %v2934 = vadd.f32 %v2846, %v2933
        %v2935 = vpop.f32.mrb[0].mxu0
        %2936 = vmatprep.mubr.bf16.mxu0 0
        %2937 = vmatmul.mubr.bf16.gmra.mrb[0].mxu0 %v2876
        %v2938 = vpop.f32.mrb[0].mxu0
        %v2939 = vadd.f32 %v2846, %v2938
        %v2940 = vpop.f32.mrb[0].mxu0
        %v2941 = vpop.f32.mrb[0].mxu0
        %v2942 = vadd.f32 %v2846, %v2941
        %v2943 = vpop.f32.mrb[0].mxu0
        %2944 = vmatprep.mubr.bf16.mxu0 0
        %2945 = vmatmul.mubr.bf16.gmra.mrb[0].mxu0 %v2879
        %v2946 = vpop.f32.mrb[0].mxu0
        %v2947 = vadd.f32 %v2846, %v2946
        %v2948 = vpop.f32.mrb[0].mxu0
        %v2949 = vpop.f32.mrb[0].mxu0
        %v2950 = vadd.f32 %v2846, %v2949
        %v2951 = vpop.f32.mrb[0].mxu0
        %2952 = vmatprep.mubr.bf16.mxu0 0
        %2953 = vmatmul.mubr.bf16.gmra.mrb[0].mxu0 %v2882
        %v2954 = vpop.f32.mrb[0].mxu0
        %v2955 = vadd.f32 %v2846, %v2954
        %v2956 = vpop.f32.mrb[0].mxu0
        %v2957 = vpop.f32.mrb[0].mxu0
        %v2958 = vadd.f32 %v2846, %v2957
        %v2959 = vpop.f32.mrb[0].mxu0
        %2960 = vmatprep.mubr.bf16.mxu0 0
        %2961 = vmatmul.mubr.bf16.gmra.mrb[0].mxu0 %v2885
        %v2962 = vpop.f32.mrb[0].mxu0
        %v2963 = vadd.f32 %v2846, %v2962
        %v2964 = vpop.f32.mrb[0].mxu0
        %v2965 = vpop.f32.mrb[0].mxu0
        %v2966 = vadd.f32 %v2846, %v2965
        %v2967 = vpop.f32.mrb[0].mxu0
        %2968 = vmatprep.mubr.bf16.mxu0 0
        %2969 = vmatmul.mubr.bf16.gmra.mrb[0].mxu0 %v2888
        %v2970 = vpop.f32.mrb[0].mxu0
        %v2971 = vadd.f32 %v2846, %v2970
        %v2972 = vpop.f32.mrb[0].mxu0
        %v2973 = vpop.f32.mrb[0].mxu0
        %v2974 = vadd.f32 %v2846, %v2973
        %v2975 = vpop.f32.mrb[0].mxu0
        %2976 = vmatprep.mubr.bf16.mxu0 0
        %2977 = vmatmul.mubr.bf16.gmra.mrb[0].mxu0 %v2891
        %v2978 = vpop.f32.mrb[0].mxu0
        %v2979 = vadd.f32 %v2846, %v2978
        %v2980 = vpop.f32.mrb[0].mxu0
        %v2981 = vpop.f32.mrb[0].mxu0
        %v2982 = vadd.f32 %v2846, %v2981
        %v2983 = vpop.f32.mrb[0].mxu0
        %2984 = vmatprep.mubr.bf16.mxu0 0
        %2985 = vmatmul.mubr.bf16.gmra.mrb[0].mxu0 %v2894
        %v2986 = vpop.f32.mrb[0].mxu0
        %v2987 = vadd.f32 %v2846, %v2986
        %v2988 = vpop.f32.mrb[0].mxu0
        %v2989 = vpop.f32.mrb[0].mxu0
        %v2990 = vadd.f32 %v2846, %v2989
        %v2991 = vpop.f32.mrb[0].mxu0
        %2992 = vdwg.mxu0
        %v2993 = vadd.f32 %v2809, %v2931
        %v2994 = vadd.f32 %v2810, %v2934
        %v2995 = vadd.f32 %v2811, %v2939
        %v2996 = vadd.f32 %v2812, %v2942
        %v2997 = vadd.f32 %v2813, %v2947
        %v2998 = vadd.f32 %v2814, %v2950
        %v2999 = vadd.f32 %v2815, %v2955
        %v3000 = vadd.f32 %v2816, %v2958
        %v3001 = vadd.f32 %v2817, %v2963
        %v3002 = vadd.f32 %v2818, %v2966
        %v3003 = vadd.f32 %v2819, %v2971
        %v3004 = vadd.f32 %v2820, %v2974
        %v3005 = vadd.f32 %v2821, %v2979
        %v3006 = vadd.f32 %v2822, %v2982
        %v3007 = vadd.f32 %v2823, %v2987
        %v3008 = vadd.f32 %v2824, %v2990
        %3009 = vst [vmem:[%s378] sm:$0xff] %v2993
        %3010 = vst [vmem:[%s378 + $0x8] sm:$0xff] %v2994
        %3011 = vst [vmem:[%s378 + $0x10] sm:$0xff] %v2995
        %3012 = vst [vmem:[%s378 + $0x18] sm:$0xff] %v2996
        %3013 = vst [vmem:[%s378 + $0x20] sm:$0xff] %v2997
        %3014 = vst [vmem:[%s378 + $0x28] sm:$0xff] %v2998
        %3015 = vst [vmem:[%s378 + $0x30] sm:$0xff] %v2999
        %3016 = vst [vmem:[%s378 + $0x38] sm:$0xff] %v3000
        %3017 = vst [vmem:[%s378 + $0x40] sm:$0xff] %v3001
        %3018 = vst [vmem:[%s378 + $0x48] sm:$0xff] %v3002
        %3019 = vst [vmem:[%s378 + $0x50] sm:$0xff] %v3003
        %3020 = vst [vmem:[%s378 + $0x58] sm:$0xff] %v3004
        %3021 = vst [vmem:[%s378 + $0x60] sm:$0xff] %v3005
        %3022 = vst [vmem:[%s378 + $0x68] sm:$0xff] %v3006
        %3023 = vst [vmem:[%s378 + $0x70] sm:$0xff] %v3007
        %3024 = vst [vmem:[%s378 + $0x78] sm:$0xff] %v3008
        %s3025 = sand.u32 %s229, 1
        %s3026 = scalar_lea.sflag [#allocation4], %s3025
        %s3027 = sand.u32 %s229, 1
        %s3028 = smul.addr %s3027, 128
        %s3029 = scalar_lea.vmem [#allocation8], %s3028
        // Predicated region
        $region69: #{tpu_custom_call.1} parent=55 // pred_check
          %p3030 = pneg %p239
        $region70: #{tpu_custom_call.1} parent=55 // pred_check_branch
          %3032 = sbr.rel (%p3030) target = $region72
        $region71: #{tpu_custom_call.1} parent=55 // pred_region
          %s3033 = smul.u32 8, %s27
          %s3035 = ssub.s32 2048, 2048
          %3036 = vsyncadd %s3026, %s3035
          %s3037 = smul.addr %s3033, 2
          %s3038 = smul.addr %s3037, 128
          %s3039 = scalar_lea.hbm %s9, %s3038
          %s3040 = sshll.u32 %s3029, 4
          %s3041 = int_to_ptr.vmem [resolvable:$true] %s3040
          %3046 = dma.vmem_to_hbm [thread:$0]  %s3041, 2048, %s3039, %s3026, 128, 128, 8
        $region72: #{tpu_custom_call.1} parent=55 // pred_fallthru
          _
      $region56: #{tpu_custom_call.1} parent=5 // pred_fallthru
        _
      %p3047 = scmp.le.s32.totalorder 2, %s22
      // Predicated region
      $region73: #{tpu_custom_call.1} parent=5 // pred_check
        %p3048 = pneg %p3047
      $region74: #{tpu_custom_call.1} parent=5 // pred_check_branch
        %3050 = sbr.rel (%p3048) target = $region76
      $region75: #{tpu_custom_call.1} parent=5 // pred_region
        %s3051 = ssub.s32 %s22, 2
        // Predicated region
        $region77: #{tpu_custom_call.1} parent=75 // pred_check
          %p3052 = pneg %p245
        $region78: #{tpu_custom_call.1} parent=75 // pred_check_branch
          %3054 = sbr.rel (%p3052) target = $region80
        $region79: #{tpu_custom_call.1} parent=75 // pred_region
          %s3055 = sand.u32 %s230, 1
          %s3056 = scalar_lea.sflag [#allocation4], %s3055
          %s3057 = sand.u32 %s230, 1
          %s3058 = smul.addr %s3057, 128
          %s3059 = scalar_lea.vmem [#allocation8], %s3058
          %3060 = dma.done %s3056, 2048
        $region80: #{tpu_custom_call.1} parent=75 // pred_fallthru
          _
      $region76: #{tpu_custom_call.1} parent=5 // pred_fallthru
        _
    $region6: #{tpu_custom_call.1} parent=1 // loop_footer
      %s26 = sadd.s32 1, %s22
    $region7: #{tpu_custom_call.1} parent=1 // loop_footer_branch
      %21 = sbr.rel target = $region3
    $region8: #{tpu_custom_call.1} parent=1 // loop_exit
      _
    %3061 = vsyncpa [#allocation3], 1
    %s3062 = scalar_lea.sflag [#allocation3], 1
    %3063 = vsyncpa %s3062, 1
    %3064 = vsyncpa [#allocation6], 1
    %3065 = vsyncpa [#allocation4], 1
    %s3066 = scalar_lea.sflag [#allocation4], 1
    %3067 = vsyncpa %s3066, 1

</llo_original>
